<compile_context>
chip_gen: v7x
topology: tpu7x:2x2x1
jax: 0.10.0
libtpu: 0.0.40
codegen_flags: <defaults>
</compile_context>

<pallas_src>
import jax
import jax.numpy as jnp
from jax.experimental import pallas as pl
from jax.experimental.pallas import tpu as pltpu


def lstm_kernel(x_ref, wih_ref, whh_ref, b_ref, wout_ref, bout_ref,
                out_ref, h_sc, c_sc):
    # x_ref   : (T*B, I)   flattened time-chunk of inputs
    # wih_ref : (I, 4H)    fused input->gate weights, column order [i|f|o|g]
    # whh_ref : (H, 4H)    fused hidden->gate weights, column order [i|f|o|g]
    # b_ref   : (1, 4H)    fused bias (b_ih + b_hh)
    # wout_ref: (H, O), bout_ref: (1, O)   -- the `self.out` Linear
    # out_ref : (T, B, O)
    # h_sc/c_sc: (B, H) recurrent state, persists across grid steps
    T, B, _ = out_ref.shape
    H = whh_ref.shape[0]

    @pl.when(pl.program_id(0) == 0)
    def _():
        h_sc[...] = jnp.zeros_like(h_sc)
        c_sc[...] = jnp.zeros_like(c_sc)

    # ---- (1) Hoisted input projection + bias: ONE lane-dense MXU matmul
    #          covering every timestep of the chunk (not on the h->h chain).
    xp = (jnp.dot(x_ref[...], wih_ref[...],
                  preferred_element_type=jnp.float32)
          + b_ref[...])                                   # (T*B, 4H)

    whh = whh_ref[...]
    h = h_sc[...]
    c = c_sc[...]

    # ---- (2) Sequential recurrence: exactly one fused (B,H)@(H,4H) matmul
    #          per step.  T is a static (small) trace-time constant, so the
    #          loop is fully unrolled and the scheduler sees the whole chain.
    hs = []
    for t in range(T):
        gates = xp[t * B:(t + 1) * B, :] + jnp.dot(
            h, whh, preferred_element_type=jnp.float32)   # (B, 4H)
        # gate layout [i | f | o | g]: one wide sigmoid slab + one tanh slab
        sig = jax.nn.sigmoid(gates[:, :3 * H])
        i_g = sig[:, 0 * H:1 * H]
        f_g = sig[:, 1 * H:2 * H]
        o_g = sig[:, 2 * H:3 * H]
        g_g = jnp.tanh(gates[:, 3 * H:])
        c = f_g * c + i_g * g_g
        h = o_g * jnp.tanh(c)
        hs.append(h)

    h_sc[...] = h
    c_sc[...] = c

    # ---- (3) Output Linear hoisted out of the recurrence (not on the h->h
    #          dependency chain); fills one VMEM block -> single HBM writeback.
    wout = wout_ref[...]
    bout = bout_ref[...]
    for t in range(T):
        out_ref[t] = (jnp.dot(hs[t], wout,
                              preferred_element_type=jnp.float32)
                      + bout).astype(out_ref.dtype)


def rnn_forward(x, wih_cat, whh_cat, b_cat, wout_t, bout, *, time_block=None):
    """x: (S, B, I) f32.  Returns (S, B, O) f32."""
    S, B, I = x.shape
    H = whh_cat.shape[0]
    O = wout_t.shape[1]
    T = S if time_block is None else time_block
    assert S % T == 0

    x2 = x.reshape(S * B, I)   # wrapper-side layout plumbing (free in XLA)

    return pl.pallas_call(
        lstm_kernel,
        out_shape=jax.ShapeDtypeStruct((S, B, O), jnp.float32),
        grid_spec=pltpu.PrefetchScalarGridSpec(
            num_scalar_prefetch=0,
            grid=(S // T,),                                 # time chunks
            in_specs=[
                pl.BlockSpec((T * B, I), lambda i: (i, 0)),     # x chunk
                pl.BlockSpec((I, 4 * H), lambda i: (0, 0)),     # W_ih fused
                pl.BlockSpec((H, 4 * H), lambda i: (0, 0)),     # W_hh fused
                pl.BlockSpec((1, 4 * H), lambda i: (0, 0)),     # bias fused
                pl.BlockSpec((H, O), lambda i: (0, 0)),         # W_out^T
                pl.BlockSpec((1, O), lambda i: (0, 0)),         # b_out
            ],
            out_specs=pl.BlockSpec((T, B, O), lambda i: (i, 0, 0)),
            scratch_shapes=[
                pltpu.VMEM((B, H), jnp.float32),   # h state (persists)
                pltpu.VMEM((B, H), jnp.float32),   # c state (persists)
            ],
        ),
        compiler_params=pltpu.CompilerParams(
            dimension_semantics=("arbitrary",)),   # recurrence => sequential
    )(x2, wih_cat, whh_cat, b_cat, wout_t, bout)


def pack_lstm_weights(w_ih, w_hh, b_ih, b_hh):
    """PyTorch stacked (4H, .) weights (gate order i,f,g,o) ->
    fused right-multiply weights (., 4H) with kernel gate order i,f,o,g."""
    H = w_hh.shape[1]
    I = w_ih.shape[1]
    perm = jnp.array([0, 1, 3, 2])   # (i, f, g, o) -> (i, f, o, g)
    wih_cat = jnp.transpose(w_ih.reshape(4, H, I)[perm], (2, 0, 1)).reshape(I, 4 * H)
    whh_cat = jnp.transpose(w_hh.reshape(4, H, H)[perm], (2, 0, 1)).reshape(H, 4 * H)
    b_cat = (b_ih + b_hh).reshape(4, H)[perm].reshape(1, 4 * H)
    return wih_cat, whh_cat, b_cat


def rnn_reference(x, w_ih, w_hh, b_ih, b_hh, w_out, b_out):
    """Pure-JAX reference using the raw PyTorch-layout weights."""
    S, B, I = x.shape
    H = w_hh.shape[1]

    def step(carry, x_t):
        h, c = carry
        g = x_t @ w_ih.T + h @ w_hh.T + b_ih + b_hh   # (B, 4H), order i,f,g,o
        i_g = jax.nn.sigmoid(g[:, 0 * H:1 * H])
        f_g = jax.nn.sigmoid(g[:, 1 * H:2 * H])
        g_g = jnp.tanh(g[:, 2 * H:3 * H])
        o_g = jax.nn.sigmoid(g[:, 3 * H:4 * H])
        c = f_g * c + i_g * g_g
        h = o_g * jnp.tanh(c)
        return (h, c), h @ w_out.T + b_out

    init = (jnp.zeros((B, H), jnp.float32), jnp.zeros((B, H), jnp.float32))
    (_, _), outs = jax.lax.scan(step, init, x)
    return outs


if __name__ == "__main__":
    SEQ, BATCH = 8, 2
    INPUT, HIDDEN, OUTPUT = 16, 32, 16

    key = jax.random.PRNGKey(0)
    ks = jax.random.split(key, 7)
    bound = 1.0 / jnp.sqrt(HIDDEN)   # PyTorch default uniform init bound

    # PyTorch layout: weight_ih (4H, I), weight_hh (4H, H), biases (4H,)
    w_ih = jax.random.uniform(ks[0], (4 * HIDDEN, INPUT), jnp.float32, -bound, bound)
    w_hh = jax.random.uniform(ks[1], (4 * HIDDEN, HIDDEN), jnp.float32, -bound, bound)
    b_ih = jax.random.uniform(ks[2], (4 * HIDDEN,), jnp.float32, -bound, bound)
    b_hh = jax.random.uniform(ks[3], (4 * HIDDEN,), jnp.float32, -bound, bound)
    w_out = jax.random.uniform(ks[4], (OUTPUT, HIDDEN), jnp.float32, -bound, bound)
    b_out = jax.random.uniform(ks[5], (OUTPUT,), jnp.float32, -bound, bound)
    x = jax.random.normal(ks[6], (SEQ, BATCH, INPUT), jnp.float32)

    wih_cat, whh_cat, b_cat = pack_lstm_weights(w_ih, w_hh, b_ih, b_hh)
    wout_t = w_out.T                    # (H, O)
    bout = b_out.reshape(1, OUTPUT)     # (1, O)

    out = rnn_forward(x, wih_cat, whh_cat, b_cat, wout_t, bout)
    out = jax.block_until_ready(out)

    ref = rnn_reference(x, w_ih, w_hh, b_ih, b_hh, w_out, b_out)
    assert out.shape == (SEQ, BATCH, OUTPUT)
    assert jnp.allclose(out, ref, atol=1e-4, rtol=1e-4), \
        float(jnp.max(jnp.abs(out - ref)))

    print("KERNEL_OK")
</pallas_src>

<mosaic_0001>
module attributes {stable_mosaic.version = 11 : i64} {
  func.func @lstm_kernel(%arg0: i32, %arg1: memref<16x16xf32, #tpu.memory_space<vmem>>, %arg2: memref<16x128xf32, #tpu.memory_space<vmem>>, %arg3: memref<32x128xf32, #tpu.memory_space<vmem>>, %arg4: memref<1x128xf32, #tpu.memory_space<vmem>>, %arg5: memref<32x16xf32, #tpu.memory_space<vmem>>, %arg6: memref<1x16xf32, #tpu.memory_space<vmem>>, %arg7: memref<8x2x16xf32, #tpu.memory_space<vmem>>, %arg8: memref<2x32xf32, #tpu.memory_space<vmem>>, %arg9: memref<2x32xf32, #tpu.memory_space<vmem>>) attributes {dimension_semantics = [#tpu.dimension_semantics<arbitrary>], iteration_bounds = array<i64: 1>, scalar_prefetch = 0 : i64, scratch_operands = 2 : i64, tpu.core_type = #tpu.core_type<tc>, window_params = [{transform_indices = @transform_0, window_bounds = array<i64: 16, 16>}, {pipeline_mode = #tpu.pipeline_mode<synchronous>, transform_indices = @transform_1, window_bounds = array<i64: 16, 128>}, {pipeline_mode = #tpu.pipeline_mode<synchronous>, transform_indices = @transform_2, window_bounds = array<i64: 32, 128>}, {pipeline_mode = #tpu.pipeline_mode<synchronous>, transform_indices = @transform_3, window_bounds = array<i64: 1, 128>}, {pipeline_mode = #tpu.pipeline_mode<synchronous>, transform_indices = @transform_4, window_bounds = array<i64: 32, 16>}, {pipeline_mode = #tpu.pipeline_mode<synchronous>, transform_indices = @transform_5, window_bounds = array<i64: 1, 16>}, {transform_indices = @transform_6, window_bounds = array<i64: 8, 2, 16>}]} {
    %c0_i32 = arith.constant 0 : i32
    %0 = arith.cmpi eq, %arg0, %c0_i32 : i32
    %1 = arith.extui %0 : i1 to i32
    %c0_i32_0 = arith.constant 0 : i32
    %2 = arith.cmpi ne, %1, %c0_i32_0 : i32
    scf.if %2 {
      %cst_61 = arith.constant 0.000000e+00 : f32
      %216 = vector.broadcast %cst_61 : f32 to vector<2x32xf32>
      %c0_62 = arith.constant 0 : index
      %c0_63 = arith.constant 0 : index
      %217 = vector.load %arg8[%c0_62, %c0_63] : memref<2x32xf32, #tpu.memory_space<vmem>>, vector<2x32xf32>
      tpu.vector_store %arg8[%c0_62, %c0_63], %216 {strides = array<i32>} : memref<2x32xf32, #tpu.memory_space<vmem>>, vector<2x32xf32>,
      %cst_64 = arith.constant 0.000000e+00 : f32
      %218 = vector.broadcast %cst_64 : f32 to vector<2x32xf32>
      %c0_65 = arith.constant 0 : index
      %c0_66 = arith.constant 0 : index
      %219 = vector.load %arg9[%c0_65, %c0_66] : memref<2x32xf32, #tpu.memory_space<vmem>>, vector<2x32xf32>
      tpu.vector_store %arg9[%c0_65, %c0_66], %218 {strides = array<i32>} : memref<2x32xf32, #tpu.memory_space<vmem>>, vector<2x32xf32>,
    } else {
    }
    %c0 = arith.constant 0 : index
    %c0_1 = arith.constant 0 : index
    %3 = vector.load %arg1[%c0, %c0_1] : memref<16x16xf32, #tpu.memory_space<vmem>>, vector<16x16xf32>
    %c0_2 = arith.constant 0 : index
    %c0_3 = arith.constant 0 : index
    %4 = vector.load %arg2[%c0_2, %c0_3] : memref<16x128xf32, #tpu.memory_space<vmem>>, vector<16x128xf32>
    %cst = arith.constant dense<0.000000e+00> : vector<16x128xf32>
    %5 = tpu.matmul %3, %4, %cst {dimension_numbers = #tpu.dot_dimension_numbers<[1], [0], [0], [1], [0, 0, 1, 1], [], []>} : vector<16x16xf32>, vector<16x128xf32>, vector<16x128xf32> -> vector<16x128xf32>
    %c0_4 = arith.constant 0 : index
    %c0_5 = arith.constant 0 : index
    %6 = vector.load %arg4[%c0_4, %c0_5] : memref<1x128xf32, #tpu.memory_space<vmem>>, vector<1x128xf32>
    %7 = vector.broadcast %6 : vector<1x128xf32> to vector<16x128xf32>
    %8 = arith.addf %5, %7 : vector<16x128xf32>
    %c0_6 = arith.constant 0 : index
    %c0_7 = arith.constant 0 : index
    %9 = vector.load %arg3[%c0_6, %c0_7] : memref<32x128xf32, #tpu.memory_space<vmem>>, vector<32x128xf32>
    %c0_8 = arith.constant 0 : index
    %c0_9 = arith.constant 0 : index
    %10 = vector.load %arg8[%c0_8, %c0_9] : memref<2x32xf32, #tpu.memory_space<vmem>>, vector<2x32xf32>
    %c0_10 = arith.constant 0 : index
    %c0_11 = arith.constant 0 : index
    %11 = vector.load %arg9[%c0_10, %c0_11] : memref<2x32xf32, #tpu.memory_space<vmem>>, vector<2x32xf32>
    %12 = vector.extract_strided_slice %8 {offsets = [0, 0], sizes = [2, 128], strides = [1, 1]} : vector<16x128xf32> to vector<2x128xf32>
    %cst_12 = arith.constant dense<0.000000e+00> : vector<2x128xf32>
    %13 = tpu.matmul %10, %9, %cst_12 {dimension_numbers = #tpu.dot_dimension_numbers<[1], [0], [0], [1], [0, 0, 1, 1], [], []>} : vector<2x32xf32>, vector<32x128xf32>, vector<2x128xf32> -> vector<2x128xf32>
    %14 = arith.addf %12, %13 : vector<2x128xf32>
    %15 = vector.extract_strided_slice %14 {offsets = [0, 0], sizes = [2, 96], strides = [1, 1]} : vector<2x128xf32> to vector<2x96xf32>
    %16 = arith.negf %15 : vector<2x96xf32>
    %17 = math.exp %16 : vector<2x96xf32>
    %cst_13 = arith.constant 1.000000e+00 : f32
    %18 = vector.broadcast %cst_13 : f32 to vector<2x96xf32>
    %19 = arith.addf %18, %17 : vector<2x96xf32>
    %20 = arith.divf %18, %19 : vector<2x96xf32>
    %21 = vector.extract_strided_slice %20 {offsets = [0, 0], sizes = [2, 32], strides = [1, 1]} : vector<2x96xf32> to vector<2x32xf32>
    %22 = vector.extract_strided_slice %20 {offsets = [0, 32], sizes = [2, 32], strides = [1, 1]} : vector<2x96xf32> to vector<2x32xf32>
    %23 = vector.extract_strided_slice %20 {offsets = [0, 64], sizes = [2, 32], strides = [1, 1]} : vector<2x96xf32> to vector<2x32xf32>
    %24 = vector.extract_strided_slice %14 {offsets = [0, 96], sizes = [2, 32], strides = [1, 1]} : vector<2x128xf32> to vector<2x32xf32>
    %25 = math.tanh %24 : vector<2x32xf32>
    %26 = arith.mulf %22, %11 : vector<2x32xf32>
    %27 = arith.mulf %21, %25 : vector<2x32xf32>
    %28 = arith.addf %26, %27 : vector<2x32xf32>
    %29 = math.tanh %28 : vector<2x32xf32>
    %30 = arith.mulf %23, %29 : vector<2x32xf32>
    %31 = vector.extract_strided_slice %8 {offsets = [2, 0], sizes = [2, 128], strides = [1, 1]} : vector<16x128xf32> to vector<2x128xf32>
    %cst_14 = arith.constant dense<0.000000e+00> : vector<2x128xf32>
    %32 = tpu.matmul %30, %9, %cst_14 {dimension_numbers = #tpu.dot_dimension_numbers<[1], [0], [0], [1], [0, 0, 1, 1], [], []>} : vector<2x32xf32>, vector<32x128xf32>, vector<2x128xf32> -> vector<2x128xf32>
    %33 = arith.addf %31, %32 : vector<2x128xf32>
    %34 = vector.extract_strided_slice %33 {offsets = [0, 0], sizes = [2, 96], strides = [1, 1]} : vector<2x128xf32> to vector<2x96xf32>
    %35 = arith.negf %34 : vector<2x96xf32>
    %36 = math.exp %35 : vector<2x96xf32>
    %cst_15 = arith.constant 1.000000e+00 : f32
    %37 = vector.broadcast %cst_15 : f32 to vector<2x96xf32>
    %38 = arith.addf %37, %36 : vector<2x96xf32>
    %39 = arith.divf %37, %38 : vector<2x96xf32>
    %40 = vector.extract_strided_slice %39 {offsets = [0, 0], sizes = [2, 32], strides = [1, 1]} : vector<2x96xf32> to vector<2x32xf32>
    %41 = vector.extract_strided_slice %39 {offsets = [0, 32], sizes = [2, 32], strides = [1, 1]} : vector<2x96xf32> to vector<2x32xf32>
    %42 = vector.extract_strided_slice %39 {offsets = [0, 64], sizes = [2, 32], strides = [1, 1]} : vector<2x96xf32> to vector<2x32xf32>
    %43 = vector.extract_strided_slice %33 {offsets = [0, 96], sizes = [2, 32], strides = [1, 1]} : vector<2x128xf32> to vector<2x32xf32>
    %44 = math.tanh %43 : vector<2x32xf32>
    %45 = arith.mulf %41, %28 : vector<2x32xf32>
    %46 = arith.mulf %40, %44 : vector<2x32xf32>
    %47 = arith.addf %45, %46 : vector<2x32xf32>
    %48 = math.tanh %47 : vector<2x32xf32>
    %49 = arith.mulf %42, %48 : vector<2x32xf32>
    %50 = vector.extract_strided_slice %8 {offsets = [4, 0], sizes = [2, 128], strides = [1, 1]} : vector<16x128xf32> to vector<2x128xf32>
    %cst_16 = arith.constant dense<0.000000e+00> : vector<2x128xf32>
    %51 = tpu.matmul %49, %9, %cst_16 {dimension_numbers = #tpu.dot_dimension_numbers<[1], [0], [0], [1], [0, 0, 1, 1], [], []>} : vector<2x32xf32>, vector<32x128xf32>, vector<2x128xf32> -> vector<2x128xf32>
    %52 = arith.addf %50, %51 : vector<2x128xf32>
    %53 = vector.extract_strided_slice %52 {offsets = [0, 0], sizes = [2, 96], strides = [1, 1]} : vector<2x128xf32> to vector<2x96xf32>
    %54 = arith.negf %53 : vector<2x96xf32>
    %55 = math.exp %54 : vector<2x96xf32>
    %cst_17 = arith.constant 1.000000e+00 : f32
    %56 = vector.broadcast %cst_17 : f32 to vector<2x96xf32>
    %57 = arith.addf %56, %55 : vector<2x96xf32>
    %58 = arith.divf %56, %57 : vector<2x96xf32>
    %59 = vector.extract_strided_slice %58 {offsets = [0, 0], sizes = [2, 32], strides = [1, 1]} : vector<2x96xf32> to vector<2x32xf32>
    %60 = vector.extract_strided_slice %58 {offsets = [0, 32], sizes = [2, 32], strides = [1, 1]} : vector<2x96xf32> to vector<2x32xf32>
    %61 = vector.extract_strided_slice %58 {offsets = [0, 64], sizes = [2, 32], strides = [1, 1]} : vector<2x96xf32> to vector<2x32xf32>
    %62 = vector.extract_strided_slice %52 {offsets = [0, 96], sizes = [2, 32], strides = [1, 1]} : vector<2x128xf32> to vector<2x32xf32>
    %63 = math.tanh %62 : vector<2x32xf32>
    %64 = arith.mulf %60, %47 : vector<2x32xf32>
    %65 = arith.mulf %59, %63 : vector<2x32xf32>
    %66 = arith.addf %64, %65 : vector<2x32xf32>
    %67 = math.tanh %66 : vector<2x32xf32>
    %68 = arith.mulf %61, %67 : vector<2x32xf32>
    %69 = vector.extract_strided_slice %8 {offsets = [6, 0], sizes = [2, 128], strides = [1, 1]} : vector<16x128xf32> to vector<2x128xf32>
    %cst_18 = arith.constant dense<0.000000e+00> : vector<2x128xf32>
    %70 = tpu.matmul %68, %9, %cst_18 {dimension_numbers = #tpu.dot_dimension_numbers<[1], [0], [0], [1], [0, 0, 1, 1], [], []>} : vector<2x32xf32>, vector<32x128xf32>, vector<2x128xf32> -> vector<2x128xf32>
    %71 = arith.addf %69, %70 : vector<2x128xf32>
    %72 = vector.extract_strided_slice %71 {offsets = [0, 0], sizes = [2, 96], strides = [1, 1]} : vector<2x128xf32> to vector<2x96xf32>
    %73 = arith.negf %72 : vector<2x96xf32>
    %74 = math.exp %73 : vector<2x96xf32>
    %cst_19 = arith.constant 1.000000e+00 : f32
    %75 = vector.broadcast %cst_19 : f32 to vector<2x96xf32>
    %76 = arith.addf %75, %74 : vector<2x96xf32>
    %77 = arith.divf %75, %76 : vector<2x96xf32>
    %78 = vector.extract_strided_slice %77 {offsets = [0, 0], sizes = [2, 32], strides = [1, 1]} : vector<2x96xf32> to vector<2x32xf32>
    %79 = vector.extract_strided_slice %77 {offsets = [0, 32], sizes = [2, 32], strides = [1, 1]} : vector<2x96xf32> to vector<2x32xf32>
    %80 = vector.extract_strided_slice %77 {offsets = [0, 64], sizes = [2, 32], strides = [1, 1]} : vector<2x96xf32> to vector<2x32xf32>
    %81 = vector.extract_strided_slice %71 {offsets = [0, 96], sizes = [2, 32], strides = [1, 1]} : vector<2x128xf32> to vector<2x32xf32>
    %82 = math.tanh %81 : vector<2x32xf32>
    %83 = arith.mulf %79, %66 : vector<2x32xf32>
    %84 = arith.mulf %78, %82 : vector<2x32xf32>
    %85 = arith.addf %83, %84 : vector<2x32xf32>
    %86 = math.tanh %85 : vector<2x32xf32>
    %87 = arith.mulf %80, %86 : vector<2x32xf32>
    %88 = vector.extract_strided_slice %8 {offsets = [8, 0], sizes = [2, 128], strides = [1, 1]} : vector<16x128xf32> to vector<2x128xf32>
    %cst_20 = arith.constant dense<0.000000e+00> : vector<2x128xf32>
    %89 = tpu.matmul %87, %9, %cst_20 {dimension_numbers = #tpu.dot_dimension_numbers<[1], [0], [0], [1], [0, 0, 1, 1], [], []>} : vector<2x32xf32>, vector<32x128xf32>, vector<2x128xf32> -> vector<2x128xf32>
    %90 = arith.addf %88, %89 : vector<2x128xf32>
    %91 = vector.extract_strided_slice %90 {offsets = [0, 0], sizes = [2, 96], strides = [1, 1]} : vector<2x128xf32> to vector<2x96xf32>
    %92 = arith.negf %91 : vector<2x96xf32>
    %93 = math.exp %92 : vector<2x96xf32>
    %cst_21 = arith.constant 1.000000e+00 : f32
    %94 = vector.broadcast %cst_21 : f32 to vector<2x96xf32>
    %95 = arith.addf %94, %93 : vector<2x96xf32>
    %96 = arith.divf %94, %95 : vector<2x96xf32>
    %97 = vector.extract_strided_slice %96 {offsets = [0, 0], sizes = [2, 32], strides = [1, 1]} : vector<2x96xf32> to vector<2x32xf32>
    %98 = vector.extract_strided_slice %96 {offsets = [0, 32], sizes = [2, 32], strides = [1, 1]} : vector<2x96xf32> to vector<2x32xf32>
    %99 = vector.extract_strided_slice %96 {offsets = [0, 64], sizes = [2, 32], strides = [1, 1]} : vector<2x96xf32> to vector<2x32xf32>
    %100 = vector.extract_strided_slice %90 {offsets = [0, 96], sizes = [2, 32], strides = [1, 1]} : vector<2x128xf32> to vector<2x32xf32>
    %101 = math.tanh %100 : vector<2x32xf32>
    %102 = arith.mulf %98, %85 : vector<2x32xf32>
    %103 = arith.mulf %97, %101 : vector<2x32xf32>
    %104 = arith.addf %102, %103 : vector<2x32xf32>
    %105 = math.tanh %104 : vector<2x32xf32>
    %106 = arith.mulf %99, %105 : vector<2x32xf32>
    %107 = vector.extract_strided_slice %8 {offsets = [10, 0], sizes = [2, 128], strides = [1, 1]} : vector<16x128xf32> to vector<2x128xf32>
    %cst_22 = arith.constant dense<0.000000e+00> : vector<2x128xf32>
    %108 = tpu.matmul %106, %9, %cst_22 {dimension_numbers = #tpu.dot_dimension_numbers<[1], [0], [0], [1], [0, 0, 1, 1], [], []>} : vector<2x32xf32>, vector<32x128xf32>, vector<2x128xf32> -> vector<2x128xf32>
    %109 = arith.addf %107, %108 : vector<2x128xf32>
    %110 = vector.extract_strided_slice %109 {offsets = [0, 0], sizes = [2, 96], strides = [1, 1]} : vector<2x128xf32> to vector<2x96xf32>
    %111 = arith.negf %110 : vector<2x96xf32>
    %112 = math.exp %111 : vector<2x96xf32>
    %cst_23 = arith.constant 1.000000e+00 : f32
    %113 = vector.broadcast %cst_23 : f32 to vector<2x96xf32>
    %114 = arith.addf %113, %112 : vector<2x96xf32>
    %115 = arith.divf %113, %114 : vector<2x96xf32>
    %116 = vector.extract_strided_slice %115 {offsets = [0, 0], sizes = [2, 32], strides = [1, 1]} : vector<2x96xf32> to vector<2x32xf32>
    %117 = vector.extract_strided_slice %115 {offsets = [0, 32], sizes = [2, 32], strides = [1, 1]} : vector<2x96xf32> to vector<2x32xf32>
    %118 = vector.extract_strided_slice %115 {offsets = [0, 64], sizes = [2, 32], strides = [1, 1]} : vector<2x96xf32> to vector<2x32xf32>
    %119 = vector.extract_strided_slice %109 {offsets = [0, 96], sizes = [2, 32], strides = [1, 1]} : vector<2x128xf32> to vector<2x32xf32>
    %120 = math.tanh %119 : vector<2x32xf32>
    %121 = arith.mulf %117, %104 : vector<2x32xf32>
    %122 = arith.mulf %116, %120 : vector<2x32xf32>
    %123 = arith.addf %121, %122 : vector<2x32xf32>
    %124 = math.tanh %123 : vector<2x32xf32>
    %125 = arith.mulf %118, %124 : vector<2x32xf32>
    %126 = vector.extract_strided_slice %8 {offsets = [12, 0], sizes = [2, 128], strides = [1, 1]} : vector<16x128xf32> to vector<2x128xf32>
    %cst_24 = arith.constant dense<0.000000e+00> : vector<2x128xf32>
    %127 = tpu.matmul %125, %9, %cst_24 {dimension_numbers = #tpu.dot_dimension_numbers<[1], [0], [0], [1], [0, 0, 1, 1], [], []>} : vector<2x32xf32>, vector<32x128xf32>, vector<2x128xf32> -> vector<2x128xf32>
    %128 = arith.addf %126, %127 : vector<2x128xf32>
    %129 = vector.extract_strided_slice %128 {offsets = [0, 0], sizes = [2, 96], strides = [1, 1]} : vector<2x128xf32> to vector<2x96xf32>
    %130 = arith.negf %129 : vector<2x96xf32>
    %131 = math.exp %130 : vector<2x96xf32>
    %cst_25 = arith.constant 1.000000e+00 : f32
    %132 = vector.broadcast %cst_25 : f32 to vector<2x96xf32>
    %133 = arith.addf %132, %131 : vector<2x96xf32>
    %134 = arith.divf %132, %133 : vector<2x96xf32>
    %135 = vector.extract_strided_slice %134 {offsets = [0, 0], sizes = [2, 32], strides = [1, 1]} : vector<2x96xf32> to vector<2x32xf32>
    %136 = vector.extract_strided_slice %134 {offsets = [0, 32], sizes = [2, 32], strides = [1, 1]} : vector<2x96xf32> to vector<2x32xf32>
    %137 = vector.extract_strided_slice %134 {offsets = [0, 64], sizes = [2, 32], strides = [1, 1]} : vector<2x96xf32> to vector<2x32xf32>
    %138 = vector.extract_strided_slice %128 {offsets = [0, 96], sizes = [2, 32], strides = [1, 1]} : vector<2x128xf32> to vector<2x32xf32>
    %139 = math.tanh %138 : vector<2x32xf32>
    %140 = arith.mulf %136, %123 : vector<2x32xf32>
    %141 = arith.mulf %135, %139 : vector<2x32xf32>
    %142 = arith.addf %140, %141 : vector<2x32xf32>
    %143 = math.tanh %142 : vector<2x32xf32>
    %144 = arith.mulf %137, %143 : vector<2x32xf32>
    %145 = vector.extract_strided_slice %8 {offsets = [14, 0], sizes = [2, 128], strides = [1, 1]} : vector<16x128xf32> to vector<2x128xf32>
    %cst_26 = arith.constant dense<0.000000e+00> : vector<2x128xf32>
    %146 = tpu.matmul %144, %9, %cst_26 {dimension_numbers = #tpu.dot_dimension_numbers<[1], [0], [0], [1], [0, 0, 1, 1], [], []>} : vector<2x32xf32>, vector<32x128xf32>, vector<2x128xf32> -> vector<2x128xf32>
    %147 = arith.addf %145, %146 : vector<2x128xf32>
    %148 = vector.extract_strided_slice %147 {offsets = [0, 0], sizes = [2, 96], strides = [1, 1]} : vector<2x128xf32> to vector<2x96xf32>
    %149 = arith.negf %148 : vector<2x96xf32>
    %150 = math.exp %149 : vector<2x96xf32>
    %cst_27 = arith.constant 1.000000e+00 : f32
    %151 = vector.broadcast %cst_27 : f32 to vector<2x96xf32>
    %152 = arith.addf %151, %150 : vector<2x96xf32>
    %153 = arith.divf %151, %152 : vector<2x96xf32>
    %154 = vector.extract_strided_slice %153 {offsets = [0, 0], sizes = [2, 32], strides = [1, 1]} : vector<2x96xf32> to vector<2x32xf32>
    %155 = vector.extract_strided_slice %153 {offsets = [0, 32], sizes = [2, 32], strides = [1, 1]} : vector<2x96xf32> to vector<2x32xf32>
    %156 = vector.extract_strided_slice %153 {offsets = [0, 64], sizes = [2, 32], strides = [1, 1]} : vector<2x96xf32> to vector<2x32xf32>
    %157 = vector.extract_strided_slice %147 {offsets = [0, 96], sizes = [2, 32], strides = [1, 1]} : vector<2x128xf32> to vector<2x32xf32>
    %158 = math.tanh %157 : vector<2x32xf32>
    %159 = arith.mulf %155, %142 : vector<2x32xf32>
    %160 = arith.mulf %154, %158 : vector<2x32xf32>
    %161 = arith.addf %159, %160 : vector<2x32xf32>
    %162 = math.tanh %161 : vector<2x32xf32>
    %163 = arith.mulf %156, %162 : vector<2x32xf32>
    %c0_28 = arith.constant 0 : index
    %c0_29 = arith.constant 0 : index
    %164 = vector.load %arg8[%c0_28, %c0_29] : memref<2x32xf32, #tpu.memory_space<vmem>>, vector<2x32xf32>
    tpu.vector_store %arg8[%c0_28, %c0_29], %163 {strides = array<i32>} : memref<2x32xf32, #tpu.memory_space<vmem>>, vector<2x32xf32>,
    %c0_30 = arith.constant 0 : index
    %c0_31 = arith.constant 0 : index
    %165 = vector.load %arg9[%c0_30, %c0_31] : memref<2x32xf32, #tpu.memory_space<vmem>>, vector<2x32xf32>
    tpu.vector_store %arg9[%c0_30, %c0_31], %161 {strides = array<i32>} : memref<2x32xf32, #tpu.memory_space<vmem>>, vector<2x32xf32>,
    %c0_32 = arith.constant 0 : index
    %c0_33 = arith.constant 0 : index
    %166 = vector.load %arg5[%c0_32, %c0_33] : memref<32x16xf32, #tpu.memory_space<vmem>>, vector<32x16xf32>
    %c0_34 = arith.constant 0 : index
    %c0_35 = arith.constant 0 : index
    %167 = vector.load %arg6[%c0_34, %c0_35] : memref<1x16xf32, #tpu.memory_space<vmem>>, vector<1x16xf32>
    %cst_36 = arith.constant dense<0.000000e+00> : vector<2x16xf32>
    %168 = tpu.matmul %30, %166, %cst_36 {dimension_numbers = #tpu.dot_dimension_numbers<[1], [0], [0], [1], [0, 0, 1, 1], [], []>} : vector<2x32xf32>, vector<32x16xf32>, vector<2x16xf32> -> vector<2x16xf32>
    %169 = vector.broadcast %167 : vector<1x16xf32> to vector<2x16xf32>
    %170 = arith.addf %168, %169 : vector<2x16xf32>
    %c0_37 = arith.constant 0 : index
    %c0_38 = arith.constant 0 : index
    %c0_39 = arith.constant 0 : index
    %171 = vector.load %arg7[%c0_37, %c0_38, %c0_39] : memref<8x2x16xf32, #tpu.memory_space<vmem>>, vector<1x2x16xf32>
    %172 = vector.shape_cast %171 : vector<1x2x16xf32> to vector<2x16xf32>
    %173 = vector.shape_cast %170 : vector<2x16xf32> to vector<1x2x16xf32>
    tpu.vector_store %arg7[%c0_37, %c0_38, %c0_39], %173 {strides = array<i32>} : memref<8x2x16xf32, #tpu.memory_space<vmem>>, vector<1x2x16xf32>,
    %cst_40 = arith.constant dense<0.000000e+00> : vector<2x16xf32>
    %174 = tpu.matmul %49, %166, %cst_40 {dimension_numbers = #tpu.dot_dimension_numbers<[1], [0], [0], [1], [0, 0, 1, 1], [], []>} : vector<2x32xf32>, vector<32x16xf32>, vector<2x16xf32> -> vector<2x16xf32>
    %175 = vector.broadcast %167 : vector<1x16xf32> to vector<2x16xf32>
    %176 = arith.addf %174, %175 : vector<2x16xf32>
    %c1 = arith.constant 1 : index
    %c0_41 = arith.constant 0 : index
    %c0_42 = arith.constant 0 : index
    %177 = vector.load %arg7[%c1, %c0_41, %c0_42] : memref<8x2x16xf32, #tpu.memory_space<vmem>>, vector<1x2x16xf32>
    %178 = vector.shape_cast %177 : vector<1x2x16xf32> to vector<2x16xf32>
    %179 = vector.shape_cast %176 : vector<2x16xf32> to vector<1x2x16xf32>
    tpu.vector_store %arg7[%c1, %c0_41, %c0_42], %179 {strides = array<i32>} : memref<8x2x16xf32, #tpu.memory_space<vmem>>, vector<1x2x16xf32>,
    %cst_43 = arith.constant dense<0.000000e+00> : vector<2x16xf32>
    %180 = tpu.matmul %68, %166, %cst_43 {dimension_numbers = #tpu.dot_dimension_numbers<[1], [0], [0], [1], [0, 0, 1, 1], [], []>} : vector<2x32xf32>, vector<32x16xf32>, vector<2x16xf32> -> vector<2x16xf32>
    %181 = vector.broadcast %167 : vector<1x16xf32> to vector<2x16xf32>
    %182 = arith.addf %180, %181 : vector<2x16xf32>
    %c2 = arith.constant 2 : index
    %c0_44 = arith.constant 0 : index
    %c0_45 = arith.constant 0 : index
    %183 = vector.load %arg7[%c2, %c0_44, %c0_45] : memref<8x2x16xf32, #tpu.memory_space<vmem>>, vector<1x2x16xf32>
    %184 = vector.shape_cast %183 : vector<1x2x16xf32> to vector<2x16xf32>
    %185 = vector.shape_cast %182 : vector<2x16xf32> to vector<1x2x16xf32>
    tpu.vector_store %arg7[%c2, %c0_44, %c0_45], %185 {strides = array<i32>} : memref<8x2x16xf32, #tpu.memory_space<vmem>>, vector<1x2x16xf32>,
    %cst_46 = arith.constant dense<0.000000e+00> : vector<2x16xf32>
    %186 = tpu.matmul %87, %166, %cst_46 {dimension_numbers = #tpu.dot_dimension_numbers<[1], [0], [0], [1], [0, 0, 1, 1], [], []>} : vector<2x32xf32>, vector<32x16xf32>, vector<2x16xf32> -> vector<2x16xf32>
    %187 = vector.broadcast %167 : vector<1x16xf32> to vector<2x16xf32>
    %188 = arith.addf %186, %187 : vector<2x16xf32>
    %c3 = arith.constant 3 : index
    %c0_47 = arith.constant 0 : index
    %c0_48 = arith.constant 0 : index
    %189 = vector.load %arg7[%c3, %c0_47, %c0_48] : memref<8x2x16xf32, #tpu.memory_space<vmem>>, vector<1x2x16xf32>
    %190 = vector.shape_cast %189 : vector<1x2x16xf32> to vector<2x16xf32>
    %191 = vector.shape_cast %188 : vector<2x16xf32> to vector<1x2x16xf32>
    tpu.vector_store %arg7[%c3, %c0_47, %c0_48], %191 {strides = array<i32>} : memref<8x2x16xf32, #tpu.memory_space<vmem>>, vector<1x2x16xf32>,
    %cst_49 = arith.constant dense<0.000000e+00> : vector<2x16xf32>
    %192 = tpu.matmul %106, %166, %cst_49 {dimension_numbers = #tpu.dot_dimension_numbers<[1], [0], [0], [1], [0, 0, 1, 1], [], []>} : vector<2x32xf32>, vector<32x16xf32>, vector<2x16xf32> -> vector<2x16xf32>
    %193 = vector.broadcast %167 : vector<1x16xf32> to vector<2x16xf32>
    %194 = arith.addf %192, %193 : vector<2x16xf32>
    %c4 = arith.constant 4 : index
    %c0_50 = arith.constant 0 : index
    %c0_51 = arith.constant 0 : index
    %195 = vector.load %arg7[%c4, %c0_50, %c0_51] : memref<8x2x16xf32, #tpu.memory_space<vmem>>, vector<1x2x16xf32>
    %196 = vector.shape_cast %195 : vector<1x2x16xf32> to vector<2x16xf32>
    %197 = vector.shape_cast %194 : vector<2x16xf32> to vector<1x2x16xf32>
    tpu.vector_store %arg7[%c4, %c0_50, %c0_51], %197 {strides = array<i32>} : memref<8x2x16xf32, #tpu.memory_space<vmem>>, vector<1x2x16xf32>,
    %cst_52 = arith.constant dense<0.000000e+00> : vector<2x16xf32>
    %198 = tpu.matmul %125, %166, %cst_52 {dimension_numbers = #tpu.dot_dimension_numbers<[1], [0], [0], [1], [0, 0, 1, 1], [], []>} : vector<2x32xf32>, vector<32x16xf32>, vector<2x16xf32> -> vector<2x16xf32>
    %199 = vector.broadcast %167 : vector<1x16xf32> to vector<2x16xf32>
    %200 = arith.addf %198, %199 : vector<2x16xf32>
    %c5 = arith.constant 5 : index
    %c0_53 = arith.constant 0 : index
    %c0_54 = arith.constant 0 : index
    %201 = vector.load %arg7[%c5, %c0_53, %c0_54] : memref<8x2x16xf32, #tpu.memory_space<vmem>>, vector<1x2x16xf32>
    %202 = vector.shape_cast %201 : vector<1x2x16xf32> to vector<2x16xf32>
    %203 = vector.shape_cast %200 : vector<2x16xf32> to vector<1x2x16xf32>
    tpu.vector_store %arg7[%c5, %c0_53, %c0_54], %203 {strides = array<i32>} : memref<8x2x16xf32, #tpu.memory_space<vmem>>, vector<1x2x16xf32>,
    %cst_55 = arith.constant dense<0.000000e+00> : vector<2x16xf32>
    %204 = tpu.matmul %144, %166, %cst_55 {dimension_numbers = #tpu.dot_dimension_numbers<[1], [0], [0], [1], [0, 0, 1, 1], [], []>} : vector<2x32xf32>, vector<32x16xf32>, vector<2x16xf32> -> vector<2x16xf32>
    %205 = vector.broadcast %167 : vector<1x16xf32> to vector<2x16xf32>
    %206 = arith.addf %204, %205 : vector<2x16xf32>
    %c6 = arith.constant 6 : index
    %c0_56 = arith.constant 0 : index
    %c0_57 = arith.constant 0 : index
    %207 = vector.load %arg7[%c6, %c0_56, %c0_57] : memref<8x2x16xf32, #tpu.memory_space<vmem>>, vector<1x2x16xf32>
    %208 = vector.shape_cast %207 : vector<1x2x16xf32> to vector<2x16xf32>
    %209 = vector.shape_cast %206 : vector<2x16xf32> to vector<1x2x16xf32>
    tpu.vector_store %arg7[%c6, %c0_56, %c0_57], %209 {strides = array<i32>} : memref<8x2x16xf32, #tpu.memory_space<vmem>>, vector<1x2x16xf32>,
    %cst_58 = arith.constant dense<0.000000e+00> : vector<2x16xf32>
    %210 = tpu.matmul %163, %166, %cst_58 {dimension_numbers = #tpu.dot_dimension_numbers<[1], [0], [0], [1], [0, 0, 1, 1], [], []>} : vector<2x32xf32>, vector<32x16xf32>, vector<2x16xf32> -> vector<2x16xf32>
    %211 = vector.broadcast %167 : vector<1x16xf32> to vector<2x16xf32>
    %212 = arith.addf %210, %211 : vector<2x16xf32>
    %c7 = arith.constant 7 : index
    %c0_59 = arith.constant 0 : index
    %c0_60 = arith.constant 0 : index
    %213 = vector.load %arg7[%c7, %c0_59, %c0_60] : memref<8x2x16xf32, #tpu.memory_space<vmem>>, vector<1x2x16xf32>
    %214 = vector.shape_cast %213 : vector<1x2x16xf32> to vector<2x16xf32>
    %215 = vector.shape_cast %212 : vector<2x16xf32> to vector<1x2x16xf32>
    tpu.vector_store %arg7[%c7, %c0_59, %c0_60], %215 {strides = array<i32>} : memref<8x2x16xf32, #tpu.memory_space<vmem>>, vector<1x2x16xf32>,
    return
  }
  func.func @transform_0(%arg0: i32) -> (i32, i32) {
    %c0_i32 = arith.constant 0 : i32
    %c0_i32_0 = arith.constant 0 : i32
    return %arg0, %c0_i32 : i32, i32
  }
  func.func @transform_1(%arg0: i32) -> (i32, i32) {
    %c0_i32 = arith.constant 0 : i32
    %c0_i32_0 = arith.constant 0 : i32
    %c0_i32_1 = arith.constant 0 : i32
    return %c0_i32, %c0_i32_0 : i32, i32
  }
  func.func @transform_2(%arg0: i32) -> (i32, i32) {
    %c0_i32 = arith.constant 0 : i32
    %c0_i32_0 = arith.constant 0 : i32
    %c0_i32_1 = arith.constant 0 : i32
    return %c0_i32, %c0_i32_0 : i32, i32
  }
  func.func @transform_3(%arg0: i32) -> (i32, i32) {
    %c0_i32 = arith.constant 0 : i32
    %c0_i32_0 = arith.constant 0 : i32
    %c0_i32_1 = arith.constant 0 : i32
    return %c0_i32, %c0_i32_0 : i32, i32
  }
  func.func @transform_4(%arg0: i32) -> (i32, i32) {
    %c0_i32 = arith.constant 0 : i32
    %c0_i32_0 = arith.constant 0 : i32
    %c0_i32_1 = arith.constant 0 : i32
    return %c0_i32, %c0_i32_0 : i32, i32
  }
  func.func @transform_5(%arg0: i32) -> (i32, i32) {
    %c0_i32 = arith.constant 0 : i32
    %c0_i32_0 = arith.constant 0 : i32
    %c0_i32_1 = arith.constant 0 : i32
    return %c0_i32, %c0_i32_0 : i32, i32
  }
  func.func @transform_6(%arg0: i32) -> (i32, i32, i32) {
    %c0_i32 = arith.constant 0 : i32
    %c0_i32_0 = arith.constant 0 : i32
    %c0_i32_1 = arith.constant 0 : i32
    return %arg0, %c0_i32, %c0_i32_0 : i32, i32, i32
  }
}

</mosaic_0001>

<llo_original>
// kernel: tpu_custom_call.1
$region0: #{tpu_custom_call.1}
  #allocation0 [shape = 'u32[]', space=smem, size = 0x4, offset = 0x4, fixed_abs, tag = 'smem constant byte address 0x4 - core index']
  #allocation1 [shape = 'u32[144,128]{1,0:T(1,128)}', space=vmem, size = 0x12000, scoped, tag = 'internal scratch']
  #allocation2 [shape = 'f32[2,32]{1,0:T(2,128)}', space=vmem, size = 0x400, scoped, tag = 'scratch operand']
  #allocation3 [shape = 'f32[2,32]{1,0:T(2,128)}', space=vmem, size = 0x400, scoped, tag = 'scratch operand']
  %s0 = inlined_call_operand.vmem [shape: f32[16,16], index: 0, kind: input, shape index: {}]
  %s1 = inlined_call_operand.hbm [shape: f32[16,128], index: 1, kind: input, shape index: {}]
  %s2 = inlined_call_operand.vmem [shape: f32[32,128], index: 2, kind: input, shape index: {}]
  %s3 = inlined_call_operand.vmem [shape: f32[1,128], index: 3, kind: input, shape index: {}]
  %s4 = inlined_call_operand.vmem [shape: f32[32,16], index: 4, kind: input, shape index: {}]
  %s5 = inlined_call_operand.vmem [shape: f32[1,16], index: 5, kind: input, shape index: {}]
  %s6 = inlined_call_operand.hbm [shape: f32[8,2,16], index: 6, kind: output, shape index: {}]
  %s7 = sld [smem:[#allocation0]]
  $region42: #{tpu_custom_call.1} parent=0
    _
  %s9 = ssub.s32 1, %s7
  %s10 = scalar_select 0, %s9, %s7
  $region1: #{tpu_custom_call.1} parent=0
    #allocation4 [shape = 'u8[8192]{0}', space=vmem, size = 0x2000, scoped, tag = 'input window, operand 1, single buffered']
    #allocation5 [shape = 's32[1]{0}', space=sflag, size = 0x4, scoped, tag = 'scoped memory for tpu_custom_call.1']
    #allocation6 [shape = 's32[1]{0}', space=sflag, size = 0x4, scoped, tag = 'scoped memory for tpu_custom_call.1']
    #allocation7 [shape = 'u8[8192]{0}', space=vmem, size = 0x2000, scoped, tag = 'output window, operand 0, single buffered']
    %11 = vsyncpa [#allocation5], 0
    %12 = vsyncpa [#allocation6], 0
    // Predicated region
    $region2: #{tpu_custom_call.1} parent=1 // pred_check
      _
    $region3: #{tpu_custom_call.1} parent=1 // pred_check_branch
      %14 = sbr.rel (0) target = $region5
    $region4: #{tpu_custom_call.1} parent=1 // pred_region
      _
    $region5: #{tpu_custom_call.1} parent=1 // pred_fallthru
      _
    // Predicated region
    $region6: #{tpu_custom_call.1} parent=1 // pred_check
      _
    $region7: #{tpu_custom_call.1} parent=1 // pred_check_branch
      %16 = sbr.rel (0) target = $region9
    $region8: #{tpu_custom_call.1} parent=1 // pred_region
      %s18 = ssub.s32 256, 256
      %19 = vsyncadd [#allocation5], %s18
      %s20 = sshll.u32 [#allocation4], 4
      %s21 = int_to_ptr.vmem [resolvable:$true] %s20
      %26 = dma.hbm_to_vmem [thread:$0]  %s1, 256, %s21, [#allocation5], 128, 128, 8
    $region9: #{tpu_custom_call.1} parent=1 // pred_fallthru
      _
    // Predicated region
    $region10: #{tpu_custom_call.1} parent=1 // pred_check
      _
    $region11: #{tpu_custom_call.1} parent=1 // pred_check_branch
      %28 = sbr.rel (0) target = $region13
    $region12: #{tpu_custom_call.1} parent=1 // pred_region
      _
    $region13: #{tpu_custom_call.1} parent=1 // pred_fallthru
      _
    // Predicated region
    $region14: #{tpu_custom_call.1} parent=1 // pred_check
      _
    $region15: #{tpu_custom_call.1} parent=1 // pred_check_branch
      %30 = sbr.rel (0) target = $region17
    $region16: #{tpu_custom_call.1} parent=1 // pred_region
      _
    $region17: #{tpu_custom_call.1} parent=1 // pred_fallthru
      _
    // Predicated region
    $region18: #{tpu_custom_call.1} parent=1 // pred_check
      _
    $region19: #{tpu_custom_call.1} parent=1 // pred_check_branch
      %32 = sbr.rel (0) target = $region21
    $region20: #{tpu_custom_call.1} parent=1 // pred_region
      _
    $region21: #{tpu_custom_call.1} parent=1 // pred_fallthru
      _
    // Predicated region
    $region22: #{tpu_custom_call.1} parent=1 // pred_check
      _
    $region23: #{tpu_custom_call.1} parent=1 // pred_check_branch
      %34 = sbr.rel (0) target = $region25
    $region24: #{tpu_custom_call.1} parent=1 // pred_region
      _
    $region25: #{tpu_custom_call.1} parent=1 // pred_fallthru
      _
    // Predicated region
    $region26: #{tpu_custom_call.1} parent=1 // pred_check
      _
    $region27: #{tpu_custom_call.1} parent=1 // pred_check_branch
      %36 = sbr.rel (0) target = $region29
    $region28: #{tpu_custom_call.1} parent=1 // pred_region
      %37 = dma.done [#allocation5], 256
    $region29: #{tpu_custom_call.1} parent=1 // pred_fallthru
      _
    %p38 = scmp.eq.s32.totalorder 0, 0
    // Predicated region
    $region30: #{tpu_custom_call.1} parent=1 // pred_check
      %p39 = pneg %p38
    $region31: #{tpu_custom_call.1} parent=1 // pred_check_branch
      %41 = sbr.rel (%p39) target = $region33
    $region32: #{tpu_custom_call.1} parent=1 // pred_region
      %vm42 = vcmask 254976
      %43 = vst.msk [vmem:[#allocation2] sm:$0x3] %vm42, 0.0
      %44 = vst.msk [vmem:[#allocation3] sm:$0x3] %vm42, 0.0
    $region33: #{tpu_custom_call.1} parent=1 // pred_fallthru
      _
    %v45 = vld [vmem:[%s0] sm:$0xff]
    %v46 = vld [vmem:[%s0 + $0x8] sm:$0xff]
    %v47 = vld [vmem:[#allocation4] sm:$0xff]
    %v48 = vld [vmem:[#allocation4 + $0x8] sm:$0xff]
    %v49 = vld [vmem:[%s3] sm:$0x1]
    %v51 = vlaneseq
    %v52 = vshrl.u32 %v51, 7
    %v53 = vsub.s32 0, %v52
    %v54 = vrot.slane %v49, %v53
    %vm56 = vcmask 130048
    %v58 = vsel %vm56, %v45, 0
    %v61 = vsel %vm56, %v46, 0
    %63 = vmatprep.subr.mxu0 0.0
    %64 = vmatpush1.msra.mxu0 %v47
    %65 = vmatprep.subr.mxu0 0.0
    %66 = vmatpush1.msra.mxu0 %v48
    %67 = vmatprep.subr.mxu0 0.0
    %68 = vmatpush1.msra.mxu0 0.0
    %69 = vmatprep.subr.mxu0 0.0
    %70 = vmatpush1.msra.mxu0 0.0
    %71 = vmatprep.subr.mxu0 0.0
    %72 = vmatpush1.msra.mxu0 0.0
    %73 = vmatprep.subr.mxu0 0.0
    %74 = vmatpush1.msra.mxu0 0.0
    %75 = vmatprep.subr.mxu0 0.0
    %76 = vmatpush1.msra.mxu0 0.0
    %77 = vmatprep.subr.mxu0 0.0
    %78 = vmatpush1.msra.mxu0 0.0
    %79 = vmatprep.subr.mxu0 0.0
    %80 = vmatpush1.msra.mxu0 0.0
    %81 = vmatprep.subr.mxu0 0.0
    %82 = vmatpush1.msra.mxu0 0.0
    %83 = vmatprep.subr.mxu0 0.0
    %84 = vmatpush1.msra.mxu0 0.0
    %85 = vmatprep.subr.mxu0 0.0
    %86 = vmatpush1.msra.mxu0 0.0
    %87 = vmatprep.subr.mxu0 0.0
    %88 = vmatpush1.msra.mxu0 0.0
    %89 = vmatprep.subr.mxu0 0.0
    %90 = vmatpush1.msra.mxu0 0.0
    %91 = vmatprep.subr.mxu0 0.0
    %92 = vmatpush1.msra.mxu0 0.0
    %93 = vmatprep.subr.mxu0 0.0
    %94 = vmatpush1.msra.mxu0 0.0
    %95 = vmatprep.subr.mxu0 0.0
    %96 = vmatpush1.msra.mxu0 0.0
    %97 = vmatprep.subr.mxu0 0.0
    %98 = vmatpush1.msra.mxu0 0.0
    %99 = vmatprep.subr.mxu0 0.0
    %100 = vmatpush1.msra.mxu0 0.0
    %101 = vmatprep.subr.mxu0 0.0
    %102 = vmatpush1.msra.mxu0 0.0
    %103 = vmatprep.subr.mxu0 0.0
    %104 = vmatpush1.msra.mxu0 0.0
    %105 = vmatprep.subr.mxu0 0.0
    %106 = vmatpush1.msra.mxu0 0.0
    %107 = vmatprep.subr.mxu0 0.0
    %108 = vmatpush1.msra.mxu0 0.0
    %109 = vmatprep.subr.mxu0 0.0
    %110 = vmatpush1.msra.mxu0 0.0
    %111 = vmatprep.subr.mxu0 0.0
    %112 = vmatpush1.msra.mxu0 0.0
    %113 = vmatprep.subr.mxu0 0.0
    %114 = vmatpush1.msra.mxu0 0.0
    %115 = vmatprep.subr.mxu0 0.0
    %116 = vmatpush1.msra.mxu0 0.0
    %117 = vmatprep.subr.mxu0 0.0
    %118 = vmatpush1.msra.mxu0 0.0
    %119 = vmatprep.subr.mxu0 0.0
    %120 = vmatpush1.msra.mxu0 0.0
    %121 = vmatprep.subr.mxu0 0.0
    %122 = vmatpush1.msra.mxu0 0.0
    %123 = vmatprep.subr.mxu0 0.0
    %124 = vmatpush1.msra.mxu0 0.0
    %125 = vmatprep.subr.mxu0 0.0
    %126 = vmatpush1.msra.mxu0 0.0
    %127 = vmatprep.mubr.f32.mxu0 0.0
    %128 = vmatmul.mubr.f32.gmra.mrb[0].mxu0 %v58
    %v129 = vpop.f32.mrb[0].mxu0
    %v130 = vadd.f32 %v54, %v129
    %v131 = vpop.f32.mrb[0].mxu0
    %132 = vmatprep.mubr.f32.mxu0 0.0
    %133 = vmatmul.mubr.f32.gmra.mrb[0].mxu0 %v61
    %v134 = vpop.f32.mrb[0].mxu0
    %v135 = vadd.f32 %v54, %v134
    %v136 = vpop.f32.mrb[0].mxu0
    %137 = vdwg.mxu0
    %v138 = vld [vmem:[%s2] sm:$0xff]
    %v139 = vld [vmem:[%s2 + $0x8] sm:$0xff]
    %v140 = vld [vmem:[%s2 + $0x10] sm:$0xff]
    %v141 = vld [vmem:[%s2 + $0x18] sm:$0xff]
    %v142 = vld [vmem:[#allocation2] sm:$0x3]
    %v143 = vld [vmem:[#allocation3] sm:$0x3]
    %vm144 = vcmask 261120
    %v146 = vsel %vm144, %v142, 0
    %148 = vmatprep.subr.mxu0 0.0
    %149 = vmatpush1.msra.mxu0 %v138
    %150 = vmatprep.subr.mxu0 0.0
    %151 = vmatpush1.msra.mxu0 %v139
    %152 = vmatprep.subr.mxu0 0.0
    %153 = vmatpush1.msra.mxu0 %v140
    %154 = vmatprep.subr.mxu0 0.0
    %155 = vmatpush1.msra.mxu0 %v141
    %156 = vmatprep.subr.mxu0 0.0
    %157 = vmatpush1.msra.mxu0 0.0
    %158 = vmatprep.subr.mxu0 0.0
    %159 = vmatpush1.msra.mxu0 0.0
    %160 = vmatprep.subr.mxu0 0.0
    %161 = vmatpush1.msra.mxu0 0.0
    %162 = vmatprep.subr.mxu0 0.0
    %163 = vmatpush1.msra.mxu0 0.0
    %164 = vmatprep.subr.mxu0 0.0
    %165 = vmatpush1.msra.mxu0 0.0
    %166 = vmatprep.subr.mxu0 0.0
    %167 = vmatpush1.msra.mxu0 0.0
    %168 = vmatprep.subr.mxu0 0.0
    %169 = vmatpush1.msra.mxu0 0.0
    %170 = vmatprep.subr.mxu0 0.0
    %171 = vmatpush1.msra.mxu0 0.0
    %172 = vmatprep.subr.mxu0 0.0
    %173 = vmatpush1.msra.mxu0 0.0
    %174 = vmatprep.subr.mxu0 0.0
    %175 = vmatpush1.msra.mxu0 0.0
    %176 = vmatprep.subr.mxu0 0.0
    %177 = vmatpush1.msra.mxu0 0.0
    %178 = vmatprep.subr.mxu0 0.0
    %179 = vmatpush1.msra.mxu0 0.0
    %180 = vmatprep.subr.mxu0 0.0
    %181 = vmatpush1.msra.mxu0 0.0
    %182 = vmatprep.subr.mxu0 0.0
    %183 = vmatpush1.msra.mxu0 0.0
    %184 = vmatprep.subr.mxu0 0.0
    %185 = vmatpush1.msra.mxu0 0.0
    %186 = vmatprep.subr.mxu0 0.0
    %187 = vmatpush1.msra.mxu0 0.0
    %188 = vmatprep.subr.mxu0 0.0
    %189 = vmatpush1.msra.mxu0 0.0
    %190 = vmatprep.subr.mxu0 0.0
    %191 = vmatpush1.msra.mxu0 0.0
    %192 = vmatprep.subr.mxu0 0.0
    %193 = vmatpush1.msra.mxu0 0.0
    %194 = vmatprep.subr.mxu0 0.0
    %195 = vmatpush1.msra.mxu0 0.0
    %196 = vmatprep.subr.mxu0 0.0
    %197 = vmatpush1.msra.mxu0 0.0
    %198 = vmatprep.subr.mxu0 0.0
    %199 = vmatpush1.msra.mxu0 0.0
    %200 = vmatprep.subr.mxu0 0.0
    %201 = vmatpush1.msra.mxu0 0.0
    %202 = vmatprep.subr.mxu0 0.0
    %203 = vmatpush1.msra.mxu0 0.0
    %204 = vmatprep.subr.mxu0 0.0
    %205 = vmatpush1.msra.mxu0 0.0
    %206 = vmatprep.subr.mxu0 0.0
    %207 = vmatpush1.msra.mxu0 0.0
    %208 = vmatprep.subr.mxu0 0.0
    %209 = vmatpush1.msra.mxu0 0.0
    %210 = vmatprep.subr.mxu0 0.0
    %211 = vmatpush1.msra.mxu0 0.0
    %212 = vmatprep.mubr.f32.mxu0 0.0
    %213 = vmatmul.mubr.f32.gmra.mrb[0].mxu0 %v146
    %v214 = vpop.f32.mrb[0].mxu0
    %v215 = vadd.f32 0.0, %v214
    %v216 = vpop.f32.mrb[0].mxu0
    %217 = vdwg.mxu0
    %v218 = vadd.f32 %v130, %v215
    %v219 = vxor.u32 %v218, 2147483648
    %v220 = vmul.f32 %v219, 1.442695
    %v221 = vpow.pop %v220
    %v222 = vadd.f32 %v221, 1.0
    %v223 = vrcp.pop %v222
    %v224 = vmul.f32 1.0, %v223
    %v225 = vtanh.pop %v218
    %227 = vrot.lane.b32.xlu0 %v143, 32
    %v228 = vpop.permute.xlu0 %227
    %v230 = vmul.f32 %v224, %v228
    %232 = vrot.lane.b32.xlu0 %v225, 32
    %v233 = vpop.permute.xlu0 %232
    %v235 = vmul.f32 %v224, %v233
    %237 = vrot.lane.b32.xlu0 %v235, 32
    %v238 = vpop.permute.xlu0 %237
    %v240 = vadd.f32 %v230, %v238
    %v241 = vtanh.pop %v240
    %243 = vrot.lane.b32.xlu0 %v241, 32
    %v244 = vpop.permute.xlu0 %243
    %v246 = vmul.f32 %v224, %v244
    %248 = vrot.lane.b32.xlu0 %v246, 64
    %v249 = vpop.permute.xlu0 %248
    %v250 = vsel %vm144, %v249, 0
    %252 = vmatprep.subr.mxu0 0.0
    %253 = vmatpush1.msra.mxu0 %v138
    %254 = vmatprep.subr.mxu0 0.0
    %255 = vmatpush1.msra.mxu0 %v139
    %256 = vmatprep.subr.mxu0 0.0
    %257 = vmatpush1.msra.mxu0 %v140
    %258 = vmatprep.subr.mxu0 0.0
    %259 = vmatpush1.msra.mxu0 %v141
    %260 = vmatprep.subr.mxu0 0.0
    %261 = vmatpush1.msra.mxu0 0.0
    %262 = vmatprep.subr.mxu0 0.0
    %263 = vmatpush1.msra.mxu0 0.0
    %264 = vmatprep.subr.mxu0 0.0
    %265 = vmatpush1.msra.mxu0 0.0
    %266 = vmatprep.subr.mxu0 0.0
    %267 = vmatpush1.msra.mxu0 0.0
    %268 = vmatprep.subr.mxu0 0.0
    %269 = vmatpush1.msra.mxu0 0.0
    %270 = vmatprep.subr.mxu0 0.0
    %271 = vmatpush1.msra.mxu0 0.0
    %272 = vmatprep.subr.mxu0 0.0
    %273 = vmatpush1.msra.mxu0 0.0
    %274 = vmatprep.subr.mxu0 0.0
    %275 = vmatpush1.msra.mxu0 0.0
    %276 = vmatprep.subr.mxu0 0.0
    %277 = vmatpush1.msra.mxu0 0.0
    %278 = vmatprep.subr.mxu0 0.0
    %279 = vmatpush1.msra.mxu0 0.0
    %280 = vmatprep.subr.mxu0 0.0
    %281 = vmatpush1.msra.mxu0 0.0
    %282 = vmatprep.subr.mxu0 0.0
    %283 = vmatpush1.msra.mxu0 0.0
    %284 = vmatprep.subr.mxu0 0.0
    %285 = vmatpush1.msra.mxu0 0.0
    %286 = vmatprep.subr.mxu0 0.0
    %287 = vmatpush1.msra.mxu0 0.0
    %288 = vmatprep.subr.mxu0 0.0
    %289 = vmatpush1.msra.mxu0 0.0
    %290 = vmatprep.subr.mxu0 0.0
    %291 = vmatpush1.msra.mxu0 0.0
    %292 = vmatprep.subr.mxu0 0.0
    %293 = vmatpush1.msra.mxu0 0.0
    %294 = vmatprep.subr.mxu0 0.0
    %295 = vmatpush1.msra.mxu0 0.0
    %296 = vmatprep.subr.mxu0 0.0
    %297 = vmatpush1.msra.mxu0 0.0
    %298 = vmatprep.subr.mxu0 0.0
    %299 = vmatpush1.msra.mxu0 0.0
    %300 = vmatprep.subr.mxu0 0.0
    %301 = vmatpush1.msra.mxu0 0.0
    %302 = vmatprep.subr.mxu0 0.0
    %303 = vmatpush1.msra.mxu0 0.0
    %304 = vmatprep.subr.mxu0 0.0
    %305 = vmatpush1.msra.mxu0 0.0
    %306 = vmatprep.subr.mxu0 0.0
    %307 = vmatpush1.msra.mxu0 0.0
    %308 = vmatprep.subr.mxu0 0.0
    %309 = vmatpush1.msra.mxu0 0.0
    %310 = vmatprep.subr.mxu0 0.0
    %311 = vmatpush1.msra.mxu0 0.0
    %312 = vmatprep.subr.mxu0 0.0
    %313 = vmatpush1.msra.mxu0 0.0
    %314 = vmatprep.subr.mxu0 0.0
    %315 = vmatpush1.msra.mxu0 0.0
    %316 = vmatprep.mubr.f32.mxu0 0.0
    %317 = vmatmul.mubr.f32.gmra.mrb[0].mxu0 %v250
    %v318 = vpop.f32.mrb[0].mxu0
    %v319 = vadd.f32 0.0, %v318
    %v320 = vpop.f32.mrb[0].mxu0
    %321 = vdwg.mxu0
    %v323 = vrot.slane %v319, 6
    %v325 = vadd.f32 %v130, %v323
    %v326 = vxor.u32 %v325, 2147483648
    %v327 = vmul.f32 %v326, 1.442695
    %v328 = vpow.pop %v327
    %v329 = vadd.f32 %v328, 1.0
    %v330 = vrcp.pop %v329
    %v331 = vmul.f32 1.0, %v330
    %v332 = vtanh.pop %v325
    %v334 = vrot.slane %v240, 6
    %v336 = vmul.f32 %v331, %v334
    %338 = vrot.lane.b32.xlu0 %v332, 32
    %v339 = vpop.permute.xlu0 %338
    %v341 = vmul.f32 %v331, %v339
    %343 = vrot.lane.b32.xlu0 %v341, 32
    %v344 = vpop.permute.xlu0 %343
    %v346 = vadd.f32 %v336, %v344
    %v347 = vtanh.pop %v346
    %349 = vrot.lane.b32.xlu0 %v347, 32
    %v350 = vpop.permute.xlu0 %349
    %v352 = vmul.f32 %v331, %v350
    %v354 = vrot.slane %v352, 2
    %355 = vrot.lane.b32.xlu0 %v354, 64
    %v356 = vpop.permute.xlu0 %355
    %v357 = vsel %vm144, %v356, 0
    %359 = vmatprep.subr.mxu0 0.0
    %360 = vmatpush1.msra.mxu0 %v138
    %361 = vmatprep.subr.mxu0 0.0
    %362 = vmatpush1.msra.mxu0 %v139
    %363 = vmatprep.subr.mxu0 0.0
    %364 = vmatpush1.msra.mxu0 %v140
    %365 = vmatprep.subr.mxu0 0.0
    %366 = vmatpush1.msra.mxu0 %v141
    %367 = vmatprep.subr.mxu0 0.0
    %368 = vmatpush1.msra.mxu0 0.0
    %369 = vmatprep.subr.mxu0 0.0
    %370 = vmatpush1.msra.mxu0 0.0
    %371 = vmatprep.subr.mxu0 0.0
    %372 = vmatpush1.msra.mxu0 0.0
    %373 = vmatprep.subr.mxu0 0.0
    %374 = vmatpush1.msra.mxu0 0.0
    %375 = vmatprep.subr.mxu0 0.0
    %376 = vmatpush1.msra.mxu0 0.0
    %377 = vmatprep.subr.mxu0 0.0
    %378 = vmatpush1.msra.mxu0 0.0
    %379 = vmatprep.subr.mxu0 0.0
    %380 = vmatpush1.msra.mxu0 0.0
    %381 = vmatprep.subr.mxu0 0.0
    %382 = vmatpush1.msra.mxu0 0.0
    %383 = vmatprep.subr.mxu0 0.0
    %384 = vmatpush1.msra.mxu0 0.0
    %385 = vmatprep.subr.mxu0 0.0
    %386 = vmatpush1.msra.mxu0 0.0
    %387 = vmatprep.subr.mxu0 0.0
    %388 = vmatpush1.msra.mxu0 0.0
    %389 = vmatprep.subr.mxu0 0.0
    %390 = vmatpush1.msra.mxu0 0.0
    %391 = vmatprep.subr.mxu0 0.0
    %392 = vmatpush1.msra.mxu0 0.0
    %393 = vmatprep.subr.mxu0 0.0
    %394 = vmatpush1.msra.mxu0 0.0
    %395 = vmatprep.subr.mxu0 0.0
    %396 = vmatpush1.msra.mxu0 0.0
    %397 = vmatprep.subr.mxu0 0.0
    %398 = vmatpush1.msra.mxu0 0.0
    %399 = vmatprep.subr.mxu0 0.0
    %400 = vmatpush1.msra.mxu0 0.0
    %401 = vmatprep.subr.mxu0 0.0
    %402 = vmatpush1.msra.mxu0 0.0
    %403 = vmatprep.subr.mxu0 0.0
    %404 = vmatpush1.msra.mxu0 0.0
    %405 = vmatprep.subr.mxu0 0.0
    %406 = vmatpush1.msra.mxu0 0.0
    %407 = vmatprep.subr.mxu0 0.0
    %408 = vmatpush1.msra.mxu0 0.0
    %409 = vmatprep.subr.mxu0 0.0
    %410 = vmatpush1.msra.mxu0 0.0
    %411 = vmatprep.subr.mxu0 0.0
    %412 = vmatpush1.msra.mxu0 0.0
    %413 = vmatprep.subr.mxu0 0.0
    %414 = vmatpush1.msra.mxu0 0.0
    %415 = vmatprep.subr.mxu0 0.0
    %416 = vmatpush1.msra.mxu0 0.0
    %417 = vmatprep.subr.mxu0 0.0
    %418 = vmatpush1.msra.mxu0 0.0
    %419 = vmatprep.subr.mxu0 0.0
    %420 = vmatpush1.msra.mxu0 0.0
    %421 = vmatprep.subr.mxu0 0.0
    %422 = vmatpush1.msra.mxu0 0.0
    %423 = vmatprep.mubr.f32.mxu0 0.0
    %424 = vmatmul.mubr.f32.gmra.mrb[0].mxu0 %v357
    %v425 = vpop.f32.mrb[0].mxu0
    %v426 = vadd.f32 0.0, %v425
    %v427 = vpop.f32.mrb[0].mxu0
    %428 = vdwg.mxu0
    %v430 = vrot.slane %v426, 4
    %v432 = vadd.f32 %v130, %v430
    %v433 = vxor.u32 %v432, 2147483648
    %v434 = vmul.f32 %v433, 1.442695
    %v435 = vpow.pop %v434
    %v436 = vadd.f32 %v435, 1.0
    %v437 = vrcp.pop %v436
    %v438 = vmul.f32 1.0, %v437
    %v439 = vtanh.pop %v432
    %v441 = vrot.slane %v346, 6
    %v443 = vmul.f32 %v438, %v441
    %445 = vrot.lane.b32.xlu0 %v439, 32
    %v446 = vpop.permute.xlu0 %445
    %v448 = vmul.f32 %v438, %v446
    %450 = vrot.lane.b32.xlu0 %v448, 32
    %v451 = vpop.permute.xlu0 %450
    %v453 = vadd.f32 %v443, %v451
    %v454 = vtanh.pop %v453
    %456 = vrot.lane.b32.xlu0 %v454, 32
    %v457 = vpop.permute.xlu0 %456
    %v459 = vmul.f32 %v438, %v457
    %v461 = vrot.slane %v459, 4
    %462 = vrot.lane.b32.xlu0 %v461, 64
    %v463 = vpop.permute.xlu0 %462
    %v464 = vsel %vm144, %v463, 0
    %466 = vmatprep.subr.mxu0 0.0
    %467 = vmatpush1.msra.mxu0 %v138
    %468 = vmatprep.subr.mxu0 0.0
    %469 = vmatpush1.msra.mxu0 %v139
    %470 = vmatprep.subr.mxu0 0.0
    %471 = vmatpush1.msra.mxu0 %v140
    %472 = vmatprep.subr.mxu0 0.0
    %473 = vmatpush1.msra.mxu0 %v141
    %474 = vmatprep.subr.mxu0 0.0
    %475 = vmatpush1.msra.mxu0 0.0
    %476 = vmatprep.subr.mxu0 0.0
    %477 = vmatpush1.msra.mxu0 0.0
    %478 = vmatprep.subr.mxu0 0.0
    %479 = vmatpush1.msra.mxu0 0.0
    %480 = vmatprep.subr.mxu0 0.0
    %481 = vmatpush1.msra.mxu0 0.0
    %482 = vmatprep.subr.mxu0 0.0
    %483 = vmatpush1.msra.mxu0 0.0
    %484 = vmatprep.subr.mxu0 0.0
    %485 = vmatpush1.msra.mxu0 0.0
    %486 = vmatprep.subr.mxu0 0.0
    %487 = vmatpush1.msra.mxu0 0.0
    %488 = vmatprep.subr.mxu0 0.0
    %489 = vmatpush1.msra.mxu0 0.0
    %490 = vmatprep.subr.mxu0 0.0
    %491 = vmatpush1.msra.mxu0 0.0
    %492 = vmatprep.subr.mxu0 0.0
    %493 = vmatpush1.msra.mxu0 0.0
    %494 = vmatprep.subr.mxu0 0.0
    %495 = vmatpush1.msra.mxu0 0.0
    %496 = vmatprep.subr.mxu0 0.0
    %497 = vmatpush1.msra.mxu0 0.0
    %498 = vmatprep.subr.mxu0 0.0
    %499 = vmatpush1.msra.mxu0 0.0
    %500 = vmatprep.subr.mxu0 0.0
    %501 = vmatpush1.msra.mxu0 0.0
    %502 = vmatprep.subr.mxu0 0.0
    %503 = vmatpush1.msra.mxu0 0.0
    %504 = vmatprep.subr.mxu0 0.0
    %505 = vmatpush1.msra.mxu0 0.0
    %506 = vmatprep.subr.mxu0 0.0
    %507 = vmatpush1.msra.mxu0 0.0
    %508 = vmatprep.subr.mxu0 0.0
    %509 = vmatpush1.msra.mxu0 0.0
    %510 = vmatprep.subr.mxu0 0.0
    %511 = vmatpush1.msra.mxu0 0.0
    %512 = vmatprep.subr.mxu0 0.0
    %513 = vmatpush1.msra.mxu0 0.0
    %514 = vmatprep.subr.mxu0 0.0
    %515 = vmatpush1.msra.mxu0 0.0
    %516 = vmatprep.subr.mxu0 0.0
    %517 = vmatpush1.msra.mxu0 0.0
    %518 = vmatprep.subr.mxu0 0.0
    %519 = vmatpush1.msra.mxu0 0.0
    %520 = vmatprep.subr.mxu0 0.0
    %521 = vmatpush1.msra.mxu0 0.0
    %522 = vmatprep.subr.mxu0 0.0
    %523 = vmatpush1.msra.mxu0 0.0
    %524 = vmatprep.subr.mxu0 0.0
    %525 = vmatpush1.msra.mxu0 0.0
    %526 = vmatprep.subr.mxu0 0.0
    %527 = vmatpush1.msra.mxu0 0.0
    %528 = vmatprep.subr.mxu0 0.0
    %529 = vmatpush1.msra.mxu0 0.0
    %530 = vmatprep.mubr.f32.mxu0 0.0
    %531 = vmatmul.mubr.f32.gmra.mrb[0].mxu0 %v464
    %v532 = vpop.f32.mrb[0].mxu0
    %v533 = vadd.f32 0.0, %v532
    %v534 = vpop.f32.mrb[0].mxu0
    %535 = vdwg.mxu0
    %v537 = vrot.slane %v533, 2
    %v539 = vadd.f32 %v130, %v537
    %v540 = vxor.u32 %v539, 2147483648
    %v541 = vmul.f32 %v540, 1.442695
    %v542 = vpow.pop %v541
    %v543 = vadd.f32 %v542, 1.0
    %v544 = vrcp.pop %v543
    %v545 = vmul.f32 1.0, %v544
    %v546 = vtanh.pop %v539
    %v548 = vrot.slane %v453, 6
    %v550 = vmul.f32 %v545, %v548
    %552 = vrot.lane.b32.xlu0 %v546, 32
    %v553 = vpop.permute.xlu0 %552
    %v555 = vmul.f32 %v545, %v553
    %557 = vrot.lane.b32.xlu0 %v555, 32
    %v558 = vpop.permute.xlu0 %557
    %v560 = vadd.f32 %v550, %v558
    %v561 = vtanh.pop %v560
    %563 = vrot.lane.b32.xlu0 %v561, 32
    %v564 = vpop.permute.xlu0 %563
    %v566 = vmul.f32 %v545, %v564
    %v568 = vrot.slane %v566, 6
    %569 = vrot.lane.b32.xlu0 %v568, 64
    %v570 = vpop.permute.xlu0 %569
    %v571 = vsel %vm144, %v570, 0
    %573 = vmatprep.subr.mxu0 0.0
    %574 = vmatpush1.msra.mxu0 %v138
    %575 = vmatprep.subr.mxu0 0.0
    %576 = vmatpush1.msra.mxu0 %v139
    %577 = vmatprep.subr.mxu0 0.0
    %578 = vmatpush1.msra.mxu0 %v140
    %579 = vmatprep.subr.mxu0 0.0
    %580 = vmatpush1.msra.mxu0 %v141
    %581 = vmatprep.subr.mxu0 0.0
    %582 = vmatpush1.msra.mxu0 0.0
    %583 = vmatprep.subr.mxu0 0.0
    %584 = vmatpush1.msra.mxu0 0.0
    %585 = vmatprep.subr.mxu0 0.0
    %586 = vmatpush1.msra.mxu0 0.0
    %587 = vmatprep.subr.mxu0 0.0
    %588 = vmatpush1.msra.mxu0 0.0
    %589 = vmatprep.subr.mxu0 0.0
    %590 = vmatpush1.msra.mxu0 0.0
    %591 = vmatprep.subr.mxu0 0.0
    %592 = vmatpush1.msra.mxu0 0.0
    %593 = vmatprep.subr.mxu0 0.0
    %594 = vmatpush1.msra.mxu0 0.0
    %595 = vmatprep.subr.mxu0 0.0
    %596 = vmatpush1.msra.mxu0 0.0
    %597 = vmatprep.subr.mxu0 0.0
    %598 = vmatpush1.msra.mxu0 0.0
    %599 = vmatprep.subr.mxu0 0.0
    %600 = vmatpush1.msra.mxu0 0.0
    %601 = vmatprep.subr.mxu0 0.0
    %602 = vmatpush1.msra.mxu0 0.0
    %603 = vmatprep.subr.mxu0 0.0
    %604 = vmatpush1.msra.mxu0 0.0
    %605 = vmatprep.subr.mxu0 0.0
    %606 = vmatpush1.msra.mxu0 0.0
    %607 = vmatprep.subr.mxu0 0.0
    %608 = vmatpush1.msra.mxu0 0.0
    %609 = vmatprep.subr.mxu0 0.0
    %610 = vmatpush1.msra.mxu0 0.0
    %611 = vmatprep.subr.mxu0 0.0
    %612 = vmatpush1.msra.mxu0 0.0
    %613 = vmatprep.subr.mxu0 0.0
    %614 = vmatpush1.msra.mxu0 0.0
    %615 = vmatprep.subr.mxu0 0.0
    %616 = vmatpush1.msra.mxu0 0.0
    %617 = vmatprep.subr.mxu0 0.0
    %618 = vmatpush1.msra.mxu0 0.0
    %619 = vmatprep.subr.mxu0 0.0
    %620 = vmatpush1.msra.mxu0 0.0
    %621 = vmatprep.subr.mxu0 0.0
    %622 = vmatpush1.msra.mxu0 0.0
    %623 = vmatprep.subr.mxu0 0.0
    %624 = vmatpush1.msra.mxu0 0.0
    %625 = vmatprep.subr.mxu0 0.0
    %626 = vmatpush1.msra.mxu0 0.0
    %627 = vmatprep.subr.mxu0 0.0
    %628 = vmatpush1.msra.mxu0 0.0
    %629 = vmatprep.subr.mxu0 0.0
    %630 = vmatpush1.msra.mxu0 0.0
    %631 = vmatprep.subr.mxu0 0.0
    %632 = vmatpush1.msra.mxu0 0.0
    %633 = vmatprep.subr.mxu0 0.0
    %634 = vmatpush1.msra.mxu0 0.0
    %635 = vmatprep.subr.mxu0 0.0
    %636 = vmatpush1.msra.mxu0 0.0
    %637 = vmatprep.mubr.f32.mxu0 0.0
    %638 = vmatmul.mubr.f32.gmra.mrb[0].mxu0 %v571
    %v639 = vpop.f32.mrb[0].mxu0
    %v640 = vadd.f32 0.0, %v639
    %v641 = vpop.f32.mrb[0].mxu0
    %642 = vdwg.mxu0
    %v643 = vadd.f32 %v135, %v640
    %v644 = vxor.u32 %v643, 2147483648
    %v645 = vmul.f32 %v644, 1.442695
    %v646 = vpow.pop %v645
    %v647 = vadd.f32 %v646, 1.0
    %v648 = vrcp.pop %v647
    %v649 = vmul.f32 1.0, %v648
    %v650 = vtanh.pop %v643
    %v652 = vrot.slane %v560, 6
    %v654 = vmul.f32 %v649, %v652
    %656 = vrot.lane.b32.xlu0 %v650, 32
    %v657 = vpop.permute.xlu0 %656
    %v659 = vmul.f32 %v649, %v657
    %661 = vrot.lane.b32.xlu0 %v659, 32
    %v662 = vpop.permute.xlu0 %661
    %v664 = vadd.f32 %v654, %v662
    %v665 = vtanh.pop %v664
    %667 = vrot.lane.b32.xlu0 %v665, 32
    %v668 = vpop.permute.xlu0 %667
    %v670 = vmul.f32 %v649, %v668
    %672 = vrot.lane.b32.xlu0 %v670, 64
    %v673 = vpop.permute.xlu0 %672
    %v674 = vsel %vm144, %v673, 0
    %676 = vmatprep.subr.mxu0 0.0
    %677 = vmatpush1.msra.mxu0 %v138
    %678 = vmatprep.subr.mxu0 0.0
    %679 = vmatpush1.msra.mxu0 %v139
    %680 = vmatprep.subr.mxu0 0.0
    %681 = vmatpush1.msra.mxu0 %v140
    %682 = vmatprep.subr.mxu0 0.0
    %683 = vmatpush1.msra.mxu0 %v141
    %684 = vmatprep.subr.mxu0 0.0
    %685 = vmatpush1.msra.mxu0 0.0
    %686 = vmatprep.subr.mxu0 0.0
    %687 = vmatpush1.msra.mxu0 0.0
    %688 = vmatprep.subr.mxu0 0.0
    %689 = vmatpush1.msra.mxu0 0.0
    %690 = vmatprep.subr.mxu0 0.0
    %691 = vmatpush1.msra.mxu0 0.0
    %692 = vmatprep.subr.mxu0 0.0
    %693 = vmatpush1.msra.mxu0 0.0
    %694 = vmatprep.subr.mxu0 0.0
    %695 = vmatpush1.msra.mxu0 0.0
    %696 = vmatprep.subr.mxu0 0.0
    %697 = vmatpush1.msra.mxu0 0.0
    %698 = vmatprep.subr.mxu0 0.0
    %699 = vmatpush1.msra.mxu0 0.0
    %700 = vmatprep.subr.mxu0 0.0
    %701 = vmatpush1.msra.mxu0 0.0
    %702 = vmatprep.subr.mxu0 0.0
    %703 = vmatpush1.msra.mxu0 0.0
    %704 = vmatprep.subr.mxu0 0.0
    %705 = vmatpush1.msra.mxu0 0.0
    %706 = vmatprep.subr.mxu0 0.0
    %707 = vmatpush1.msra.mxu0 0.0
    %708 = vmatprep.subr.mxu0 0.0
    %709 = vmatpush1.msra.mxu0 0.0
    %710 = vmatprep.subr.mxu0 0.0
    %711 = vmatpush1.msra.mxu0 0.0
    %712 = vmatprep.subr.mxu0 0.0
    %713 = vmatpush1.msra.mxu0 0.0
    %714 = vmatprep.subr.mxu0 0.0
    %715 = vmatpush1.msra.mxu0 0.0
    %716 = vmatprep.subr.mxu0 0.0
    %717 = vmatpush1.msra.mxu0 0.0
    %718 = vmatprep.subr.mxu0 0.0
    %719 = vmatpush1.msra.mxu0 0.0
    %720 = vmatprep.subr.mxu0 0.0
    %721 = vmatpush1.msra.mxu0 0.0
    %722 = vmatprep.subr.mxu0 0.0
    %723 = vmatpush1.msra.mxu0 0.0
    %724 = vmatprep.subr.mxu0 0.0
    %725 = vmatpush1.msra.mxu0 0.0
    %726 = vmatprep.subr.mxu0 0.0
    %727 = vmatpush1.msra.mxu0 0.0
    %728 = vmatprep.subr.mxu0 0.0
    %729 = vmatpush1.msra.mxu0 0.0
    %730 = vmatprep.subr.mxu0 0.0
    %731 = vmatpush1.msra.mxu0 0.0
    %732 = vmatprep.subr.mxu0 0.0
    %733 = vmatpush1.msra.mxu0 0.0
    %734 = vmatprep.subr.mxu0 0.0
    %735 = vmatpush1.msra.mxu0 0.0
    %736 = vmatprep.subr.mxu0 0.0
    %737 = vmatpush1.msra.mxu0 0.0
    %738 = vmatprep.subr.mxu0 0.0
    %739 = vmatpush1.msra.mxu0 0.0
    %740 = vmatprep.mubr.f32.mxu0 0.0
    %741 = vmatmul.mubr.f32.gmra.mrb[0].mxu0 %v674
    %v742 = vpop.f32.mrb[0].mxu0
    %v743 = vadd.f32 0.0, %v742
    %v744 = vpop.f32.mrb[0].mxu0
    %745 = vdwg.mxu0
    %v747 = vrot.slane %v743, 6
    %v749 = vadd.f32 %v135, %v747
    %v750 = vxor.u32 %v749, 2147483648
    %v751 = vmul.f32 %v750, 1.442695
    %v752 = vpow.pop %v751
    %v753 = vadd.f32 %v752, 1.0
    %v754 = vrcp.pop %v753
    %v755 = vmul.f32 1.0, %v754
    %v756 = vtanh.pop %v749
    %v758 = vrot.slane %v664, 6
    %v760 = vmul.f32 %v755, %v758
    %762 = vrot.lane.b32.xlu0 %v756, 32
    %v763 = vpop.permute.xlu0 %762
    %v765 = vmul.f32 %v755, %v763
    %767 = vrot.lane.b32.xlu0 %v765, 32
    %v768 = vpop.permute.xlu0 %767
    %v770 = vadd.f32 %v760, %v768
    %v771 = vtanh.pop %v770
    %773 = vrot.lane.b32.xlu0 %v771, 32
    %v774 = vpop.permute.xlu0 %773
    %v776 = vmul.f32 %v755, %v774
    %v778 = vrot.slane %v776, 2
    %779 = vrot.lane.b32.xlu0 %v778, 64
    %v780 = vpop.permute.xlu0 %779
    %v781 = vsel %vm144, %v780, 0
    %783 = vmatprep.subr.mxu0 0.0
    %784 = vmatpush1.msra.mxu0 %v138
    %785 = vmatprep.subr.mxu0 0.0
    %786 = vmatpush1.msra.mxu0 %v139
    %787 = vmatprep.subr.mxu0 0.0
    %788 = vmatpush1.msra.mxu0 %v140
    %789 = vmatprep.subr.mxu0 0.0
    %790 = vmatpush1.msra.mxu0 %v141
    %791 = vmatprep.subr.mxu0 0.0
    %792 = vmatpush1.msra.mxu0 0.0
    %793 = vmatprep.subr.mxu0 0.0
    %794 = vmatpush1.msra.mxu0 0.0
    %795 = vmatprep.subr.mxu0 0.0
    %796 = vmatpush1.msra.mxu0 0.0
    %797 = vmatprep.subr.mxu0 0.0
    %798 = vmatpush1.msra.mxu0 0.0
    %799 = vmatprep.subr.mxu0 0.0
    %800 = vmatpush1.msra.mxu0 0.0
    %801 = vmatprep.subr.mxu0 0.0
    %802 = vmatpush1.msra.mxu0 0.0
    %803 = vmatprep.subr.mxu0 0.0
    %804 = vmatpush1.msra.mxu0 0.0
    %805 = vmatprep.subr.mxu0 0.0
    %806 = vmatpush1.msra.mxu0 0.0
    %807 = vmatprep.subr.mxu0 0.0
    %808 = vmatpush1.msra.mxu0 0.0
    %809 = vmatprep.subr.mxu0 0.0
    %810 = vmatpush1.msra.mxu0 0.0
    %811 = vmatprep.subr.mxu0 0.0
    %812 = vmatpush1.msra.mxu0 0.0
    %813 = vmatprep.subr.mxu0 0.0
    %814 = vmatpush1.msra.mxu0 0.0
    %815 = vmatprep.subr.mxu0 0.0
    %816 = vmatpush1.msra.mxu0 0.0
    %817 = vmatprep.subr.mxu0 0.0
    %818 = vmatpush1.msra.mxu0 0.0
    %819 = vmatprep.subr.mxu0 0.0
    %820 = vmatpush1.msra.mxu0 0.0
    %821 = vmatprep.subr.mxu0 0.0
    %822 = vmatpush1.msra.mxu0 0.0
    %823 = vmatprep.subr.mxu0 0.0
    %824 = vmatpush1.msra.mxu0 0.0
    %825 = vmatprep.subr.mxu0 0.0
    %826 = vmatpush1.msra.mxu0 0.0
    %827 = vmatprep.subr.mxu0 0.0
    %828 = vmatpush1.msra.mxu0 0.0
    %829 = vmatprep.subr.mxu0 0.0
    %830 = vmatpush1.msra.mxu0 0.0
    %831 = vmatprep.subr.mxu0 0.0
    %832 = vmatpush1.msra.mxu0 0.0
    %833 = vmatprep.subr.mxu0 0.0
    %834 = vmatpush1.msra.mxu0 0.0
    %835 = vmatprep.subr.mxu0 0.0
    %836 = vmatpush1.msra.mxu0 0.0
    %837 = vmatprep.subr.mxu0 0.0
    %838 = vmatpush1.msra.mxu0 0.0
    %839 = vmatprep.subr.mxu0 0.0
    %840 = vmatpush1.msra.mxu0 0.0
    %841 = vmatprep.subr.mxu0 0.0
    %842 = vmatpush1.msra.mxu0 0.0
    %843 = vmatprep.subr.mxu0 0.0
    %844 = vmatpush1.msra.mxu0 0.0
    %845 = vmatprep.subr.mxu0 0.0
    %846 = vmatpush1.msra.mxu0 0.0
    %847 = vmatprep.mubr.f32.mxu0 0.0
    %848 = vmatmul.mubr.f32.gmra.mrb[0].mxu0 %v781
    %v849 = vpop.f32.mrb[0].mxu0
    %v850 = vadd.f32 0.0, %v849
    %v851 = vpop.f32.mrb[0].mxu0
    %852 = vdwg.mxu0
    %v854 = vrot.slane %v850, 4
    %v856 = vadd.f32 %v135, %v854
    %v857 = vxor.u32 %v856, 2147483648
    %v858 = vmul.f32 %v857, 1.442695
    %v859 = vpow.pop %v858
    %v860 = vadd.f32 %v859, 1.0
    %v861 = vrcp.pop %v860
    %v862 = vmul.f32 1.0, %v861
    %v863 = vtanh.pop %v856
    %v865 = vrot.slane %v770, 6
    %v867 = vmul.f32 %v862, %v865
    %869 = vrot.lane.b32.xlu0 %v863, 32
    %v870 = vpop.permute.xlu0 %869
    %v872 = vmul.f32 %v862, %v870
    %874 = vrot.lane.b32.xlu0 %v872, 32
    %v875 = vpop.permute.xlu0 %874
    %v877 = vadd.f32 %v867, %v875
    %v878 = vtanh.pop %v877
    %880 = vrot.lane.b32.xlu0 %v878, 32
    %v881 = vpop.permute.xlu0 %880
    %v883 = vmul.f32 %v862, %v881
    %v885 = vrot.slane %v883, 4
    %886 = vrot.lane.b32.xlu0 %v885, 64
    %v887 = vpop.permute.xlu0 %886
    %v888 = vsel %vm144, %v887, 0
    %890 = vmatprep.subr.mxu0 0.0
    %891 = vmatpush1.msra.mxu0 %v138
    %892 = vmatprep.subr.mxu0 0.0
    %893 = vmatpush1.msra.mxu0 %v139
    %894 = vmatprep.subr.mxu0 0.0
    %895 = vmatpush1.msra.mxu0 %v140
    %896 = vmatprep.subr.mxu0 0.0
    %897 = vmatpush1.msra.mxu0 %v141
    %898 = vmatprep.subr.mxu0 0.0
    %899 = vmatpush1.msra.mxu0 0.0
    %900 = vmatprep.subr.mxu0 0.0
    %901 = vmatpush1.msra.mxu0 0.0
    %902 = vmatprep.subr.mxu0 0.0
    %903 = vmatpush1.msra.mxu0 0.0
    %904 = vmatprep.subr.mxu0 0.0
    %905 = vmatpush1.msra.mxu0 0.0
    %906 = vmatprep.subr.mxu0 0.0
    %907 = vmatpush1.msra.mxu0 0.0
    %908 = vmatprep.subr.mxu0 0.0
    %909 = vmatpush1.msra.mxu0 0.0
    %910 = vmatprep.subr.mxu0 0.0
    %911 = vmatpush1.msra.mxu0 0.0
    %912 = vmatprep.subr.mxu0 0.0
    %913 = vmatpush1.msra.mxu0 0.0
    %914 = vmatprep.subr.mxu0 0.0
    %915 = vmatpush1.msra.mxu0 0.0
    %916 = vmatprep.subr.mxu0 0.0
    %917 = vmatpush1.msra.mxu0 0.0
    %918 = vmatprep.subr.mxu0 0.0
    %919 = vmatpush1.msra.mxu0 0.0
    %920 = vmatprep.subr.mxu0 0.0
    %921 = vmatpush1.msra.mxu0 0.0
    %922 = vmatprep.subr.mxu0 0.0
    %923 = vmatpush1.msra.mxu0 0.0
    %924 = vmatprep.subr.mxu0 0.0
    %925 = vmatpush1.msra.mxu0 0.0
    %926 = vmatprep.subr.mxu0 0.0
    %927 = vmatpush1.msra.mxu0 0.0
    %928 = vmatprep.subr.mxu0 0.0
    %929 = vmatpush1.msra.mxu0 0.0
    %930 = vmatprep.subr.mxu0 0.0
    %931 = vmatpush1.msra.mxu0 0.0
    %932 = vmatprep.subr.mxu0 0.0
    %933 = vmatpush1.msra.mxu0 0.0
    %934 = vmatprep.subr.mxu0 0.0
    %935 = vmatpush1.msra.mxu0 0.0
    %936 = vmatprep.subr.mxu0 0.0
    %937 = vmatpush1.msra.mxu0 0.0
    %938 = vmatprep.subr.mxu0 0.0
    %939 = vmatpush1.msra.mxu0 0.0
    %940 = vmatprep.subr.mxu0 0.0
    %941 = vmatpush1.msra.mxu0 0.0
    %942 = vmatprep.subr.mxu0 0.0
    %943 = vmatpush1.msra.mxu0 0.0
    %944 = vmatprep.subr.mxu0 0.0
    %945 = vmatpush1.msra.mxu0 0.0
    %946 = vmatprep.subr.mxu0 0.0
    %947 = vmatpush1.msra.mxu0 0.0
    %948 = vmatprep.subr.mxu0 0.0
    %949 = vmatpush1.msra.mxu0 0.0
    %950 = vmatprep.subr.mxu0 0.0
    %951 = vmatpush1.msra.mxu0 0.0
    %952 = vmatprep.subr.mxu0 0.0
    %953 = vmatpush1.msra.mxu0 0.0
    %954 = vmatprep.mubr.f32.mxu0 0.0
    %955 = vmatmul.mubr.f32.gmra.mrb[0].mxu0 %v888
    %v956 = vpop.f32.mrb[0].mxu0
    %v957 = vadd.f32 0.0, %v956
    %v958 = vpop.f32.mrb[0].mxu0
    %959 = vdwg.mxu0
    %v961 = vrot.slane %v957, 2
    %v963 = vadd.f32 %v135, %v961
    %v964 = vxor.u32 %v963, 2147483648
    %v965 = vmul.f32 %v964, 1.442695
    %v966 = vpow.pop %v965
    %v967 = vadd.f32 %v966, 1.0
    %v968 = vrcp.pop %v967
    %v969 = vmul.f32 1.0, %v968
    %v970 = vtanh.pop %v963
    %v972 = vrot.slane %v877, 6
    %v974 = vmul.f32 %v969, %v972
    %976 = vrot.lane.b32.xlu0 %v970, 32
    %v977 = vpop.permute.xlu0 %976
    %v979 = vmul.f32 %v969, %v977
    %981 = vrot.lane.b32.xlu0 %v979, 32
    %v982 = vpop.permute.xlu0 %981
    %v984 = vadd.f32 %v974, %v982
    %v985 = vtanh.pop %v984
    %987 = vrot.lane.b32.xlu0 %v985, 32
    %v988 = vpop.permute.xlu0 %987
    %v990 = vmul.f32 %v969, %v988
    %992 = vrot.lane.b32.xlu0 %v990, 64
    %v993 = vpop.permute.xlu0 %992
    %vm995 = vcmask 261126
    %996 = vst.msk [vmem:[#allocation2 - $0x6] sm:$0xc0] %vm995, %v993
    %998 = vrot.lane.b32.xlu0 %v984, 96
    %v999 = vpop.permute.xlu0 %998
    %1001 = vst.msk [vmem:[#allocation3 - $0x6] sm:$0xc0] %vm995, %v999
    %v1002 = vld [vmem:[%s4] sm:$0xff]
    %v1003 = vld [vmem:[%s4 + $0x8] sm:$0xff]
    %v1004 = vld [vmem:[%s4 + $0x10] sm:$0xff]
    %v1005 = vld [vmem:[%s4 + $0x18] sm:$0xff]
    %v1006 = vld [vmem:[%s5] sm:$0x1]
    %v1008 = vlaneseq
    %v1009 = vshrl.u32 %v1008, 7
    %v1010 = vsub.s32 0, %v1009
    %v1011 = vrot.slane %v1006, %v1010
    %1013 = vmatprep.subr.mxu0 0.0
    %1014 = vmatpush1.msra.mxu0 %v1002
    %1015 = vmatprep.subr.mxu0 0.0
    %1016 = vmatpush1.msra.mxu0 %v1003
    %1017 = vmatprep.subr.mxu0 0.0
    %1018 = vmatpush1.msra.mxu0 %v1004
    %1019 = vmatprep.subr.mxu0 0.0
    %1020 = vmatpush1.msra.mxu0 %v1005
    %1021 = vmatprep.subr.mxu0 0.0
    %1022 = vmatpush1.msra.mxu0 0.0
    %1023 = vmatprep.subr.mxu0 0.0
    %1024 = vmatpush1.msra.mxu0 0.0
    %1025 = vmatprep.subr.mxu0 0.0
    %1026 = vmatpush1.msra.mxu0 0.0
    %1027 = vmatprep.subr.mxu0 0.0
    %1028 = vmatpush1.msra.mxu0 0.0
    %1029 = vmatprep.subr.mxu0 0.0
    %1030 = vmatpush1.msra.mxu0 0.0
    %1031 = vmatprep.subr.mxu0 0.0
    %1032 = vmatpush1.msra.mxu0 0.0
    %1033 = vmatprep.subr.mxu0 0.0
    %1034 = vmatpush1.msra.mxu0 0.0
    %1035 = vmatprep.subr.mxu0 0.0
    %1036 = vmatpush1.msra.mxu0 0.0
    %1037 = vmatprep.subr.mxu0 0.0
    %1038 = vmatpush1.msra.mxu0 0.0
    %1039 = vmatprep.subr.mxu0 0.0
    %1040 = vmatpush1.msra.mxu0 0.0
    %1041 = vmatprep.subr.mxu0 0.0
    %1042 = vmatpush1.msra.mxu0 0.0
    %1043 = vmatprep.subr.mxu0 0.0
    %1044 = vmatpush1.msra.mxu0 0.0
    %1045 = vmatprep.subr.mxu0 0.0
    %1046 = vmatpush1.msra.mxu0 0.0
    %1047 = vmatprep.subr.mxu0 0.0
    %1048 = vmatpush1.msra.mxu0 0.0
    %1049 = vmatprep.subr.mxu0 0.0
    %1050 = vmatpush1.msra.mxu0 0.0
    %1051 = vmatprep.subr.mxu0 0.0
    %1052 = vmatpush1.msra.mxu0 0.0
    %1053 = vmatprep.subr.mxu0 0.0
    %1054 = vmatpush1.msra.mxu0 0.0
    %1055 = vmatprep.subr.mxu0 0.0
    %1056 = vmatpush1.msra.mxu0 0.0
    %1057 = vmatprep.subr.mxu0 0.0
    %1058 = vmatpush1.msra.mxu0 0.0
    %1059 = vmatprep.subr.mxu0 0.0
    %1060 = vmatpush1.msra.mxu0 0.0
    %1061 = vmatprep.subr.mxu0 0.0
    %1062 = vmatpush1.msra.mxu0 0.0
    %1063 = vmatprep.subr.mxu0 0.0
    %1064 = vmatpush1.msra.mxu0 0.0
    %1065 = vmatprep.subr.mxu0 0.0
    %1066 = vmatpush1.msra.mxu0 0.0
    %1067 = vmatprep.subr.mxu0 0.0
    %1068 = vmatpush1.msra.mxu0 0.0
    %1069 = vmatprep.subr.mxu0 0.0
    %1070 = vmatpush1.msra.mxu0 0.0
    %1071 = vmatprep.subr.mxu0 0.0
    %1072 = vmatpush1.msra.mxu0 0.0
    %1073 = vmatprep.subr.mxu0 0.0
    %1074 = vmatpush1.msra.mxu0 0.0
    %1075 = vmatprep.subr.mxu0 0.0
    %1076 = vmatpush1.msra.mxu0 0.0
    %1077 = vmatprep.mubr.f32.mxu0 0.0
    %1078 = vmatmul.mubr.f32.gmra.mrb[0].mxu0 %v250
    %v1079 = vpop.f32.mrb[0].mxu0
    %v1080 = vadd.f32 %v1011, %v1079
    %v1081 = vpop.f32.mrb[0].mxu0
    %1082 = vdwg.mxu0
    %vm1083 = vcmask 123904
    %1084 = vst.msk [vmem:[#allocation7] sm:$0x3] %vm1083, %v1080
    %1085 = vmatprep.subr.mxu0 0.0
    %1086 = vmatpush1.msra.mxu0 %v1002
    %1087 = vmatprep.subr.mxu0 0.0
    %1088 = vmatpush1.msra.mxu0 %v1003
    %1089 = vmatprep.subr.mxu0 0.0
    %1090 = vmatpush1.msra.mxu0 %v1004
    %1091 = vmatprep.subr.mxu0 0.0
    %1092 = vmatpush1.msra.mxu0 %v1005
    %1093 = vmatprep.subr.mxu0 0.0
    %1094 = vmatpush1.msra.mxu0 0.0
    %1095 = vmatprep.subr.mxu0 0.0
    %1096 = vmatpush1.msra.mxu0 0.0
    %1097 = vmatprep.subr.mxu0 0.0
    %1098 = vmatpush1.msra.mxu0 0.0
    %1099 = vmatprep.subr.mxu0 0.0
    %1100 = vmatpush1.msra.mxu0 0.0
    %1101 = vmatprep.subr.mxu0 0.0
    %1102 = vmatpush1.msra.mxu0 0.0
    %1103 = vmatprep.subr.mxu0 0.0
    %1104 = vmatpush1.msra.mxu0 0.0
    %1105 = vmatprep.subr.mxu0 0.0
    %1106 = vmatpush1.msra.mxu0 0.0
    %1107 = vmatprep.subr.mxu0 0.0
    %1108 = vmatpush1.msra.mxu0 0.0
    %1109 = vmatprep.subr.mxu0 0.0
    %1110 = vmatpush1.msra.mxu0 0.0
    %1111 = vmatprep.subr.mxu0 0.0
    %1112 = vmatpush1.msra.mxu0 0.0
    %1113 = vmatprep.subr.mxu0 0.0
    %1114 = vmatpush1.msra.mxu0 0.0
    %1115 = vmatprep.subr.mxu0 0.0
    %1116 = vmatpush1.msra.mxu0 0.0
    %1117 = vmatprep.subr.mxu0 0.0
    %1118 = vmatpush1.msra.mxu0 0.0
    %1119 = vmatprep.subr.mxu0 0.0
    %1120 = vmatpush1.msra.mxu0 0.0
    %1121 = vmatprep.subr.mxu0 0.0
    %1122 = vmatpush1.msra.mxu0 0.0
    %1123 = vmatprep.subr.mxu0 0.0
    %1124 = vmatpush1.msra.mxu0 0.0
    %1125 = vmatprep.subr.mxu0 0.0
    %1126 = vmatpush1.msra.mxu0 0.0
    %1127 = vmatprep.subr.mxu0 0.0
    %1128 = vmatpush1.msra.mxu0 0.0
    %1129 = vmatprep.subr.mxu0 0.0
    %1130 = vmatpush1.msra.mxu0 0.0
    %1131 = vmatprep.subr.mxu0 0.0
    %1132 = vmatpush1.msra.mxu0 0.0
    %1133 = vmatprep.subr.mxu0 0.0
    %1134 = vmatpush1.msra.mxu0 0.0
    %1135 = vmatprep.subr.mxu0 0.0
    %1136 = vmatpush1.msra.mxu0 0.0
    %1137 = vmatprep.subr.mxu0 0.0
    %1138 = vmatpush1.msra.mxu0 0.0
    %1139 = vmatprep.subr.mxu0 0.0
    %1140 = vmatpush1.msra.mxu0 0.0
    %1141 = vmatprep.subr.mxu0 0.0
    %1142 = vmatpush1.msra.mxu0 0.0
    %1143 = vmatprep.subr.mxu0 0.0
    %1144 = vmatpush1.msra.mxu0 0.0
    %1145 = vmatprep.subr.mxu0 0.0
    %1146 = vmatpush1.msra.mxu0 0.0
    %1147 = vmatprep.subr.mxu0 0.0
    %1148 = vmatpush1.msra.mxu0 0.0
    %1149 = vmatprep.mubr.f32.mxu0 0.0
    %1150 = vmatmul.mubr.f32.gmra.mrb[0].mxu0 %v357
    %v1151 = vpop.f32.mrb[0].mxu0
    %v1152 = vadd.f32 %v1011, %v1151
    %v1153 = vpop.f32.mrb[0].mxu0
    %1154 = vdwg.mxu0
    %s1155 = scalar_lea.vmem [#allocation7], 2
    %1156 = vst.msk [vmem:[%s1155] sm:$0x3] %vm1083, %v1152
    %1157 = vmatprep.subr.mxu0 0.0
    %1158 = vmatpush1.msra.mxu0 %v1002
    %1159 = vmatprep.subr.mxu0 0.0
    %1160 = vmatpush1.msra.mxu0 %v1003
    %1161 = vmatprep.subr.mxu0 0.0
    %1162 = vmatpush1.msra.mxu0 %v1004
    %1163 = vmatprep.subr.mxu0 0.0
    %1164 = vmatpush1.msra.mxu0 %v1005
    %1165 = vmatprep.subr.mxu0 0.0
    %1166 = vmatpush1.msra.mxu0 0.0
    %1167 = vmatprep.subr.mxu0 0.0
    %1168 = vmatpush1.msra.mxu0 0.0
    %1169 = vmatprep.subr.mxu0 0.0
    %1170 = vmatpush1.msra.mxu0 0.0
    %1171 = vmatprep.subr.mxu0 0.0
    %1172 = vmatpush1.msra.mxu0 0.0
    %1173 = vmatprep.subr.mxu0 0.0
    %1174 = vmatpush1.msra.mxu0 0.0
    %1175 = vmatprep.subr.mxu0 0.0
    %1176 = vmatpush1.msra.mxu0 0.0
    %1177 = vmatprep.subr.mxu0 0.0
    %1178 = vmatpush1.msra.mxu0 0.0
    %1179 = vmatprep.subr.mxu0 0.0
    %1180 = vmatpush1.msra.mxu0 0.0
    %1181 = vmatprep.subr.mxu0 0.0
    %1182 = vmatpush1.msra.mxu0 0.0
    %1183 = vmatprep.subr.mxu0 0.0
    %1184 = vmatpush1.msra.mxu0 0.0
    %1185 = vmatprep.subr.mxu0 0.0
    %1186 = vmatpush1.msra.mxu0 0.0
    %1187 = vmatprep.subr.mxu0 0.0
    %1188 = vmatpush1.msra.mxu0 0.0
    %1189 = vmatprep.subr.mxu0 0.0
    %1190 = vmatpush1.msra.mxu0 0.0
    %1191 = vmatprep.subr.mxu0 0.0
    %1192 = vmatpush1.msra.mxu0 0.0
    %1193 = vmatprep.subr.mxu0 0.0
    %1194 = vmatpush1.msra.mxu0 0.0
    %1195 = vmatprep.subr.mxu0 0.0
    %1196 = vmatpush1.msra.mxu0 0.0
    %1197 = vmatprep.subr.mxu0 0.0
    %1198 = vmatpush1.msra.mxu0 0.0
    %1199 = vmatprep.subr.mxu0 0.0
    %1200 = vmatpush1.msra.mxu0 0.0
    %1201 = vmatprep.subr.mxu0 0.0
    %1202 = vmatpush1.msra.mxu0 0.0
    %1203 = vmatprep.subr.mxu0 0.0
    %1204 = vmatpush1.msra.mxu0 0.0
    %1205 = vmatprep.subr.mxu0 0.0
    %1206 = vmatpush1.msra.mxu0 0.0
    %1207 = vmatprep.subr.mxu0 0.0
    %1208 = vmatpush1.msra.mxu0 0.0
    %1209 = vmatprep.subr.mxu0 0.0
    %1210 = vmatpush1.msra.mxu0 0.0
    %1211 = vmatprep.subr.mxu0 0.0
    %1212 = vmatpush1.msra.mxu0 0.0
    %1213 = vmatprep.subr.mxu0 0.0
    %1214 = vmatpush1.msra.mxu0 0.0
    %1215 = vmatprep.subr.mxu0 0.0
    %1216 = vmatpush1.msra.mxu0 0.0
    %1217 = vmatprep.subr.mxu0 0.0
    %1218 = vmatpush1.msra.mxu0 0.0
    %1219 = vmatprep.subr.mxu0 0.0
    %1220 = vmatpush1.msra.mxu0 0.0
    %1221 = vmatprep.mubr.f32.mxu0 0.0
    %1222 = vmatmul.mubr.f32.gmra.mrb[0].mxu0 %v464
    %v1223 = vpop.f32.mrb[0].mxu0
    %v1224 = vadd.f32 %v1011, %v1223
    %v1225 = vpop.f32.mrb[0].mxu0
    %1226 = vdwg.mxu0
    %s1227 = scalar_lea.vmem [#allocation7], 4
    %1228 = vst.msk [vmem:[%s1227] sm:$0x3] %vm1083, %v1224
    %1229 = vmatprep.subr.mxu0 0.0
    %1230 = vmatpush1.msra.mxu0 %v1002
    %1231 = vmatprep.subr.mxu0 0.0
    %1232 = vmatpush1.msra.mxu0 %v1003
    %1233 = vmatprep.subr.mxu0 0.0
    %1234 = vmatpush1.msra.mxu0 %v1004
    %1235 = vmatprep.subr.mxu0 0.0
    %1236 = vmatpush1.msra.mxu0 %v1005
    %1237 = vmatprep.subr.mxu0 0.0
    %1238 = vmatpush1.msra.mxu0 0.0
    %1239 = vmatprep.subr.mxu0 0.0
    %1240 = vmatpush1.msra.mxu0 0.0
    %1241 = vmatprep.subr.mxu0 0.0
    %1242 = vmatpush1.msra.mxu0 0.0
    %1243 = vmatprep.subr.mxu0 0.0
    %1244 = vmatpush1.msra.mxu0 0.0
    %1245 = vmatprep.subr.mxu0 0.0
    %1246 = vmatpush1.msra.mxu0 0.0
    %1247 = vmatprep.subr.mxu0 0.0
    %1248 = vmatpush1.msra.mxu0 0.0
    %1249 = vmatprep.subr.mxu0 0.0
    %1250 = vmatpush1.msra.mxu0 0.0
    %1251 = vmatprep.subr.mxu0 0.0
    %1252 = vmatpush1.msra.mxu0 0.0
    %1253 = vmatprep.subr.mxu0 0.0
    %1254 = vmatpush1.msra.mxu0 0.0
    %1255 = vmatprep.subr.mxu0 0.0
    %1256 = vmatpush1.msra.mxu0 0.0
    %1257 = vmatprep.subr.mxu0 0.0
    %1258 = vmatpush1.msra.mxu0 0.0
    %1259 = vmatprep.subr.mxu0 0.0
    %1260 = vmatpush1.msra.mxu0 0.0
    %1261 = vmatprep.subr.mxu0 0.0
    %1262 = vmatpush1.msra.mxu0 0.0
    %1263 = vmatprep.subr.mxu0 0.0
    %1264 = vmatpush1.msra.mxu0 0.0
    %1265 = vmatprep.subr.mxu0 0.0
    %1266 = vmatpush1.msra.mxu0 0.0
    %1267 = vmatprep.subr.mxu0 0.0
    %1268 = vmatpush1.msra.mxu0 0.0
    %1269 = vmatprep.subr.mxu0 0.0
    %1270 = vmatpush1.msra.mxu0 0.0
    %1271 = vmatprep.subr.mxu0 0.0
    %1272 = vmatpush1.msra.mxu0 0.0
    %1273 = vmatprep.subr.mxu0 0.0
    %1274 = vmatpush1.msra.mxu0 0.0
    %1275 = vmatprep.subr.mxu0 0.0
    %1276 = vmatpush1.msra.mxu0 0.0
    %1277 = vmatprep.subr.mxu0 0.0
    %1278 = vmatpush1.msra.mxu0 0.0
    %1279 = vmatprep.subr.mxu0 0.0
    %1280 = vmatpush1.msra.mxu0 0.0
    %1281 = vmatprep.subr.mxu0 0.0
    %1282 = vmatpush1.msra.mxu0 0.0
    %1283 = vmatprep.subr.mxu0 0.0
    %1284 = vmatpush1.msra.mxu0 0.0
    %1285 = vmatprep.subr.mxu0 0.0
    %1286 = vmatpush1.msra.mxu0 0.0
    %1287 = vmatprep.subr.mxu0 0.0
    %1288 = vmatpush1.msra.mxu0 0.0
    %1289 = vmatprep.subr.mxu0 0.0
    %1290 = vmatpush1.msra.mxu0 0.0
    %1291 = vmatprep.subr.mxu0 0.0
    %1292 = vmatpush1.msra.mxu0 0.0
    %1293 = vmatprep.mubr.f32.mxu0 0.0
    %1294 = vmatmul.mubr.f32.gmra.mrb[0].mxu0 %v571
    %v1295 = vpop.f32.mrb[0].mxu0
    %v1296 = vadd.f32 %v1011, %v1295
    %v1297 = vpop.f32.mrb[0].mxu0
    %1298 = vdwg.mxu0
    %s1299 = scalar_lea.vmem [#allocation7], 6
    %1300 = vst.msk [vmem:[%s1299] sm:$0x3] %vm1083, %v1296
    %1301 = vmatprep.subr.mxu0 0.0
    %1302 = vmatpush1.msra.mxu0 %v1002
    %1303 = vmatprep.subr.mxu0 0.0
    %1304 = vmatpush1.msra.mxu0 %v1003
    %1305 = vmatprep.subr.mxu0 0.0
    %1306 = vmatpush1.msra.mxu0 %v1004
    %1307 = vmatprep.subr.mxu0 0.0
    %1308 = vmatpush1.msra.mxu0 %v1005
    %1309 = vmatprep.subr.mxu0 0.0
    %1310 = vmatpush1.msra.mxu0 0.0
    %1311 = vmatprep.subr.mxu0 0.0
    %1312 = vmatpush1.msra.mxu0 0.0
    %1313 = vmatprep.subr.mxu0 0.0
    %1314 = vmatpush1.msra.mxu0 0.0
    %1315 = vmatprep.subr.mxu0 0.0
    %1316 = vmatpush1.msra.mxu0 0.0
    %1317 = vmatprep.subr.mxu0 0.0
    %1318 = vmatpush1.msra.mxu0 0.0
    %1319 = vmatprep.subr.mxu0 0.0
    %1320 = vmatpush1.msra.mxu0 0.0
    %1321 = vmatprep.subr.mxu0 0.0
    %1322 = vmatpush1.msra.mxu0 0.0
    %1323 = vmatprep.subr.mxu0 0.0
    %1324 = vmatpush1.msra.mxu0 0.0
    %1325 = vmatprep.subr.mxu0 0.0
    %1326 = vmatpush1.msra.mxu0 0.0
    %1327 = vmatprep.subr.mxu0 0.0
    %1328 = vmatpush1.msra.mxu0 0.0
    %1329 = vmatprep.subr.mxu0 0.0
    %1330 = vmatpush1.msra.mxu0 0.0
    %1331 = vmatprep.subr.mxu0 0.0
    %1332 = vmatpush1.msra.mxu0 0.0
    %1333 = vmatprep.subr.mxu0 0.0
    %1334 = vmatpush1.msra.mxu0 0.0
    %1335 = vmatprep.subr.mxu0 0.0
    %1336 = vmatpush1.msra.mxu0 0.0
    %1337 = vmatprep.subr.mxu0 0.0
    %1338 = vmatpush1.msra.mxu0 0.0
    %1339 = vmatprep.subr.mxu0 0.0
    %1340 = vmatpush1.msra.mxu0 0.0
    %1341 = vmatprep.subr.mxu0 0.0
    %1342 = vmatpush1.msra.mxu0 0.0
    %1343 = vmatprep.subr.mxu0 0.0
    %1344 = vmatpush1.msra.mxu0 0.0
    %1345 = vmatprep.subr.mxu0 0.0
    %1346 = vmatpush1.msra.mxu0 0.0
    %1347 = vmatprep.subr.mxu0 0.0
    %1348 = vmatpush1.msra.mxu0 0.0
    %1349 = vmatprep.subr.mxu0 0.0
    %1350 = vmatpush1.msra.mxu0 0.0
    %1351 = vmatprep.subr.mxu0 0.0
    %1352 = vmatpush1.msra.mxu0 0.0
    %1353 = vmatprep.subr.mxu0 0.0
    %1354 = vmatpush1.msra.mxu0 0.0
    %1355 = vmatprep.subr.mxu0 0.0
    %1356 = vmatpush1.msra.mxu0 0.0
    %1357 = vmatprep.subr.mxu0 0.0
    %1358 = vmatpush1.msra.mxu0 0.0
    %1359 = vmatprep.subr.mxu0 0.0
    %1360 = vmatpush1.msra.mxu0 0.0
    %1361 = vmatprep.subr.mxu0 0.0
    %1362 = vmatpush1.msra.mxu0 0.0
    %1363 = vmatprep.subr.mxu0 0.0
    %1364 = vmatpush1.msra.mxu0 0.0
    %1365 = vmatprep.mubr.f32.mxu0 0.0
    %1366 = vmatmul.mubr.f32.gmra.mrb[0].mxu0 %v674
    %v1367 = vpop.f32.mrb[0].mxu0
    %v1368 = vadd.f32 %v1011, %v1367
    %v1369 = vpop.f32.mrb[0].mxu0
    %1370 = vdwg.mxu0
    %s1371 = scalar_lea.vmem [#allocation7], 8
    %1372 = vst.msk [vmem:[%s1371] sm:$0x3] %vm1083, %v1368
    %1373 = vmatprep.subr.mxu0 0.0
    %1374 = vmatpush1.msra.mxu0 %v1002
    %1375 = vmatprep.subr.mxu0 0.0
    %1376 = vmatpush1.msra.mxu0 %v1003
    %1377 = vmatprep.subr.mxu0 0.0
    %1378 = vmatpush1.msra.mxu0 %v1004
    %1379 = vmatprep.subr.mxu0 0.0
    %1380 = vmatpush1.msra.mxu0 %v1005
    %1381 = vmatprep.subr.mxu0 0.0
    %1382 = vmatpush1.msra.mxu0 0.0
    %1383 = vmatprep.subr.mxu0 0.0
    %1384 = vmatpush1.msra.mxu0 0.0
    %1385 = vmatprep.subr.mxu0 0.0
    %1386 = vmatpush1.msra.mxu0 0.0
    %1387 = vmatprep.subr.mxu0 0.0
    %1388 = vmatpush1.msra.mxu0 0.0
    %1389 = vmatprep.subr.mxu0 0.0
    %1390 = vmatpush1.msra.mxu0 0.0
    %1391 = vmatprep.subr.mxu0 0.0
    %1392 = vmatpush1.msra.mxu0 0.0
    %1393 = vmatprep.subr.mxu0 0.0
    %1394 = vmatpush1.msra.mxu0 0.0
    %1395 = vmatprep.subr.mxu0 0.0
    %1396 = vmatpush1.msra.mxu0 0.0
    %1397 = vmatprep.subr.mxu0 0.0
    %1398 = vmatpush1.msra.mxu0 0.0
    %1399 = vmatprep.subr.mxu0 0.0
    %1400 = vmatpush1.msra.mxu0 0.0
    %1401 = vmatprep.subr.mxu0 0.0
    %1402 = vmatpush1.msra.mxu0 0.0
    %1403 = vmatprep.subr.mxu0 0.0
    %1404 = vmatpush1.msra.mxu0 0.0
    %1405 = vmatprep.subr.mxu0 0.0
    %1406 = vmatpush1.msra.mxu0 0.0
    %1407 = vmatprep.subr.mxu0 0.0
    %1408 = vmatpush1.msra.mxu0 0.0
    %1409 = vmatprep.subr.mxu0 0.0
    %1410 = vmatpush1.msra.mxu0 0.0
    %1411 = vmatprep.subr.mxu0 0.0
    %1412 = vmatpush1.msra.mxu0 0.0
    %1413 = vmatprep.subr.mxu0 0.0
    %1414 = vmatpush1.msra.mxu0 0.0
    %1415 = vmatprep.subr.mxu0 0.0
    %1416 = vmatpush1.msra.mxu0 0.0
    %1417 = vmatprep.subr.mxu0 0.0
    %1418 = vmatpush1.msra.mxu0 0.0
    %1419 = vmatprep.subr.mxu0 0.0
    %1420 = vmatpush1.msra.mxu0 0.0
    %1421 = vmatprep.subr.mxu0 0.0
    %1422 = vmatpush1.msra.mxu0 0.0
    %1423 = vmatprep.subr.mxu0 0.0
    %1424 = vmatpush1.msra.mxu0 0.0
    %1425 = vmatprep.subr.mxu0 0.0
    %1426 = vmatpush1.msra.mxu0 0.0
    %1427 = vmatprep.subr.mxu0 0.0
    %1428 = vmatpush1.msra.mxu0 0.0
    %1429 = vmatprep.subr.mxu0 0.0
    %1430 = vmatpush1.msra.mxu0 0.0
    %1431 = vmatprep.subr.mxu0 0.0
    %1432 = vmatpush1.msra.mxu0 0.0
    %1433 = vmatprep.subr.mxu0 0.0
    %1434 = vmatpush1.msra.mxu0 0.0
    %1435 = vmatprep.subr.mxu0 0.0
    %1436 = vmatpush1.msra.mxu0 0.0
    %1437 = vmatprep.mubr.f32.mxu0 0.0
    %1438 = vmatmul.mubr.f32.gmra.mrb[0].mxu0 %v781
    %v1439 = vpop.f32.mrb[0].mxu0
    %v1440 = vadd.f32 %v1011, %v1439
    %v1441 = vpop.f32.mrb[0].mxu0
    %1442 = vdwg.mxu0
    %s1443 = scalar_lea.vmem [#allocation7], 10
    %1444 = vst.msk [vmem:[%s1443] sm:$0x3] %vm1083, %v1440
    %1445 = vmatprep.subr.mxu0 0.0
    %1446 = vmatpush1.msra.mxu0 %v1002
    %1447 = vmatprep.subr.mxu0 0.0
    %1448 = vmatpush1.msra.mxu0 %v1003
    %1449 = vmatprep.subr.mxu0 0.0
    %1450 = vmatpush1.msra.mxu0 %v1004
    %1451 = vmatprep.subr.mxu0 0.0
    %1452 = vmatpush1.msra.mxu0 %v1005
    %1453 = vmatprep.subr.mxu0 0.0
    %1454 = vmatpush1.msra.mxu0 0.0
    %1455 = vmatprep.subr.mxu0 0.0
    %1456 = vmatpush1.msra.mxu0 0.0
    %1457 = vmatprep.subr.mxu0 0.0
    %1458 = vmatpush1.msra.mxu0 0.0
    %1459 = vmatprep.subr.mxu0 0.0
    %1460 = vmatpush1.msra.mxu0 0.0
    %1461 = vmatprep.subr.mxu0 0.0
    %1462 = vmatpush1.msra.mxu0 0.0
    %1463 = vmatprep.subr.mxu0 0.0
    %1464 = vmatpush1.msra.mxu0 0.0
    %1465 = vmatprep.subr.mxu0 0.0
    %1466 = vmatpush1.msra.mxu0 0.0
    %1467 = vmatprep.subr.mxu0 0.0
    %1468 = vmatpush1.msra.mxu0 0.0
    %1469 = vmatprep.subr.mxu0 0.0
    %1470 = vmatpush1.msra.mxu0 0.0
    %1471 = vmatprep.subr.mxu0 0.0
    %1472 = vmatpush1.msra.mxu0 0.0
    %1473 = vmatprep.subr.mxu0 0.0
    %1474 = vmatpush1.msra.mxu0 0.0
    %1475 = vmatprep.subr.mxu0 0.0
    %1476 = vmatpush1.msra.mxu0 0.0
    %1477 = vmatprep.subr.mxu0 0.0
    %1478 = vmatpush1.msra.mxu0 0.0
    %1479 = vmatprep.subr.mxu0 0.0
    %1480 = vmatpush1.msra.mxu0 0.0
    %1481 = vmatprep.subr.mxu0 0.0
    %1482 = vmatpush1.msra.mxu0 0.0
    %1483 = vmatprep.subr.mxu0 0.0
    %1484 = vmatpush1.msra.mxu0 0.0
    %1485 = vmatprep.subr.mxu0 0.0
    %1486 = vmatpush1.msra.mxu0 0.0
    %1487 = vmatprep.subr.mxu0 0.0
    %1488 = vmatpush1.msra.mxu0 0.0
    %1489 = vmatprep.subr.mxu0 0.0
    %1490 = vmatpush1.msra.mxu0 0.0
    %1491 = vmatprep.subr.mxu0 0.0
    %1492 = vmatpush1.msra.mxu0 0.0
    %1493 = vmatprep.subr.mxu0 0.0
    %1494 = vmatpush1.msra.mxu0 0.0
    %1495 = vmatprep.subr.mxu0 0.0
    %1496 = vmatpush1.msra.mxu0 0.0
    %1497 = vmatprep.subr.mxu0 0.0
    %1498 = vmatpush1.msra.mxu0 0.0
    %1499 = vmatprep.subr.mxu0 0.0
    %1500 = vmatpush1.msra.mxu0 0.0
    %1501 = vmatprep.subr.mxu0 0.0
    %1502 = vmatpush1.msra.mxu0 0.0
    %1503 = vmatprep.subr.mxu0 0.0
    %1504 = vmatpush1.msra.mxu0 0.0
    %1505 = vmatprep.subr.mxu0 0.0
    %1506 = vmatpush1.msra.mxu0 0.0
    %1507 = vmatprep.subr.mxu0 0.0
    %1508 = vmatpush1.msra.mxu0 0.0
    %1509 = vmatprep.mubr.f32.mxu0 0.0
    %1510 = vmatmul.mubr.f32.gmra.mrb[0].mxu0 %v888
    %v1511 = vpop.f32.mrb[0].mxu0
    %v1512 = vadd.f32 %v1011, %v1511
    %v1513 = vpop.f32.mrb[0].mxu0
    %1514 = vdwg.mxu0
    %s1515 = scalar_lea.vmem [#allocation7], 12
    %1516 = vst.msk [vmem:[%s1515] sm:$0x3] %vm1083, %v1512
    %v1517 = vrot.slane %v990, 6
    %1518 = vrot.lane.b32.xlu0 %v1517, 64
    %v1519 = vpop.permute.xlu0 %1518
    %v1520 = vsel %vm144, %v1519, 0
    %1522 = vmatprep.subr.mxu0 0.0
    %1523 = vmatpush1.msra.mxu0 %v1002
    %1524 = vmatprep.subr.mxu0 0.0
    %1525 = vmatpush1.msra.mxu0 %v1003
    %1526 = vmatprep.subr.mxu0 0.0
    %1527 = vmatpush1.msra.mxu0 %v1004
    %1528 = vmatprep.subr.mxu0 0.0
    %1529 = vmatpush1.msra.mxu0 %v1005
    %1530 = vmatprep.subr.mxu0 0.0
    %1531 = vmatpush1.msra.mxu0 0.0
    %1532 = vmatprep.subr.mxu0 0.0
    %1533 = vmatpush1.msra.mxu0 0.0
    %1534 = vmatprep.subr.mxu0 0.0
    %1535 = vmatpush1.msra.mxu0 0.0
    %1536 = vmatprep.subr.mxu0 0.0
    %1537 = vmatpush1.msra.mxu0 0.0
    %1538 = vmatprep.subr.mxu0 0.0
    %1539 = vmatpush1.msra.mxu0 0.0
    %1540 = vmatprep.subr.mxu0 0.0
    %1541 = vmatpush1.msra.mxu0 0.0
    %1542 = vmatprep.subr.mxu0 0.0
    %1543 = vmatpush1.msra.mxu0 0.0
    %1544 = vmatprep.subr.mxu0 0.0
    %1545 = vmatpush1.msra.mxu0 0.0
    %1546 = vmatprep.subr.mxu0 0.0
    %1547 = vmatpush1.msra.mxu0 0.0
    %1548 = vmatprep.subr.mxu0 0.0
    %1549 = vmatpush1.msra.mxu0 0.0
    %1550 = vmatprep.subr.mxu0 0.0
    %1551 = vmatpush1.msra.mxu0 0.0
    %1552 = vmatprep.subr.mxu0 0.0
    %1553 = vmatpush1.msra.mxu0 0.0
    %1554 = vmatprep.subr.mxu0 0.0
    %1555 = vmatpush1.msra.mxu0 0.0
    %1556 = vmatprep.subr.mxu0 0.0
    %1557 = vmatpush1.msra.mxu0 0.0
    %1558 = vmatprep.subr.mxu0 0.0
    %1559 = vmatpush1.msra.mxu0 0.0
    %1560 = vmatprep.subr.mxu0 0.0
    %1561 = vmatpush1.msra.mxu0 0.0
    %1562 = vmatprep.subr.mxu0 0.0
    %1563 = vmatpush1.msra.mxu0 0.0
    %1564 = vmatprep.subr.mxu0 0.0
    %1565 = vmatpush1.msra.mxu0 0.0
    %1566 = vmatprep.subr.mxu0 0.0
    %1567 = vmatpush1.msra.mxu0 0.0
    %1568 = vmatprep.subr.mxu0 0.0
    %1569 = vmatpush1.msra.mxu0 0.0
    %1570 = vmatprep.subr.mxu0 0.0
    %1571 = vmatpush1.msra.mxu0 0.0
    %1572 = vmatprep.subr.mxu0 0.0
    %1573 = vmatpush1.msra.mxu0 0.0
    %1574 = vmatprep.subr.mxu0 0.0
    %1575 = vmatpush1.msra.mxu0 0.0
    %1576 = vmatprep.subr.mxu0 0.0
    %1577 = vmatpush1.msra.mxu0 0.0
    %1578 = vmatprep.subr.mxu0 0.0
    %1579 = vmatpush1.msra.mxu0 0.0
    %1580 = vmatprep.subr.mxu0 0.0
    %1581 = vmatpush1.msra.mxu0 0.0
    %1582 = vmatprep.subr.mxu0 0.0
    %1583 = vmatpush1.msra.mxu0 0.0
    %1584 = vmatprep.subr.mxu0 0.0
    %1585 = vmatpush1.msra.mxu0 0.0
    %1586 = vmatprep.mubr.f32.mxu0 0.0
    %1587 = vmatmul.mubr.f32.gmra.mrb[0].mxu0 %v1520
    %v1588 = vpop.f32.mrb[0].mxu0
    %v1589 = vadd.f32 %v1011, %v1588
    %v1590 = vpop.f32.mrb[0].mxu0
    %1591 = vdwg.mxu0
    %s1592 = scalar_lea.vmem [#allocation7], 14
    %1593 = vst.msk [vmem:[%s1592] sm:$0x3] %vm1083, %v1589
    // Predicated region
    $region34: #{tpu_custom_call.1} parent=1 // pred_check
      _
    $region35: #{tpu_custom_call.1} parent=1 // pred_check_branch
      %1595 = sbr.rel (0) target = $region37
    $region36: #{tpu_custom_call.1} parent=1 // pred_region
      %s1597 = ssub.s32 256, 256
      %1598 = vsyncadd [#allocation6], %s1597
      %s1599 = sshll.u32 [#allocation7], 4
      %s1600 = int_to_ptr.vmem [resolvable:$true] %s1599
      %1605 = dma.vmem_to_hbm [thread:$0]  %s1600, 256, %s6, [#allocation6], 32, 32, 2
    $region37: #{tpu_custom_call.1} parent=1 // pred_fallthru
      _
    // Predicated region
    $region38: #{tpu_custom_call.1} parent=1 // pred_check
      _
    $region39: #{tpu_custom_call.1} parent=1 // pred_check_branch
      %1607 = sbr.rel (0) target = $region41
    $region40: #{tpu_custom_call.1} parent=1 // pred_region
      %1608 = dma.done [#allocation6], 256
    $region41: #{tpu_custom_call.1} parent=1 // pred_fallthru
      _
    %1609 = vsyncpa [#allocation5], 1
    %1610 = vsyncpa [#allocation6], 1

</llo_original>
